<compile_context>
chip_gen: v6e
topology: v6e:2x2x1
jax: 0.10.0
libtpu: 0.0.40
codegen_flags: <defaults>
</compile_context>

<pallas_src>
import jax
import jax.numpy as jnp
from jax.experimental import pallas as pl
from jax.experimental.pallas import tpu as pltpu


def _encoder_kernel(x_ref,
                    w1_ref, b1_ref, w2_ref, b2_ref, w3_ref, b3_ref,
                    w4_ref, b4_ref, w5_ref, b5_ref,
                    w67_ref, b67_ref,
                    out_ref):
    # x block is already bf16 (cast once in the wrapper).
    h = x_ref[...]

    def dense_relu(h_bf16, w_ref, b_ref):
        # bf16 x bf16 -> f32 accumulate on the MXU.
        y = jnp.dot(h_bf16, w_ref[...], preferred_element_type=jnp.float32)
        # Bias add + ReLU stay in f32 (v5e has no bf16 VPU path).
        y = jnp.maximum(y + b_ref[...], 0.0)
        # Cast only the next dot's input back to bf16.
        return y.astype(jnp.bfloat16)

    h = dense_relu(h, w1_ref, b1_ref)   # (TB, 512)
    h = dense_relu(h, w2_ref, b2_ref)   # (TB, 256)
    h = dense_relu(h, w3_ref, b3_ref)   # (TB, 128)
    h = dense_relu(h, w4_ref, b4_ref)   # (TB, 64)
    h = dense_relu(h, w5_ref, b5_ref)   # (TB, 32)

    # Fused latent heads: one (32, out_pad) matmul, one lane-dense (128-mult)
    # full-width store.
    out = jnp.dot(h, w67_ref[...], preferred_element_type=jnp.float32) + b67_ref[...]
    out_ref[...] = out.astype(out_ref.dtype)


def encoder6layers_forward(x, params):
    """x: (B, C, H, W) float32. params: dict of (in,out) f32 weights, (1,out) f32 biases."""
    B = x.shape[0]
    x_flat = x.reshape(B, -1)                     # same ordering as torch.flatten(x, 1)
    F_in = x_flat.shape[1]
    latent_dims = params["w6"].shape[1]

    # ---- one-time casts / fusions (outside the kernel) ----
    w_bf = [params[f"w{i}"].astype(jnp.bfloat16) for i in range(1, 6)]
    b_f32 = [params[f"b{i}"] for i in range(1, 6)]

    out_dim = 2 * latent_dims
    # Pad the fused head to a multiple of 128 output columns -> unmasked
    # full-lane output stores.  Padding columns are exactly zero.
    out_pad = -(-out_dim // 128) * 128
    w67 = jnp.concatenate([params["w6"], params["w7"]], axis=1)
    b67 = jnp.concatenate([params["b6"], params["b7"]], axis=1)
    if out_pad != out_dim:
        w67 = jnp.pad(w67, ((0, 0), (0, out_pad - out_dim)))
        b67 = jnp.pad(b67, ((0, 0), (0, out_pad - out_dim)))
    w67 = w67.astype(jnp.bfloat16)
    b67 = b67.astype(jnp.float32)                 # f32 (1, out_pad)

    # ---- batch tiling: pad to a sublane-friendly multiple of 8, tile <= 256 rows ----
    TB = 256 if B >= 256 else (-(-B // 8) * 8)
    B_pad = -(-B // TB) * TB
    x_bf = x_flat.astype(jnp.bfloat16)
    if B_pad != B:
        x_bf = jnp.pad(x_bf, ((0, B_pad - B), (0, 0)))

    grid = (B_pad // TB,)

    def _resident(arr):
        # Full-array block, constant index -> stays VMEM-resident across grid steps.
        return pl.BlockSpec(arr.shape, lambda i: (0, 0))

    args = [x_bf]
    in_specs = [pl.BlockSpec((TB, F_in), lambda i: (i, 0))]
    for w, b in zip(w_bf, b_f32):
        args += [w, b]
        in_specs += [_resident(w), _resident(b)]
    args += [w67, b67]
    in_specs += [_resident(w67), _resident(b67)]

    # ---- cost estimate + honest VMEM budget ----
    flops = 2 * B_pad * (F_in * 512 + 512 * 256 + 256 * 128 + 128 * 64 + 64 * 32
                         + 32 * out_pad)
    resident_bytes = sum(int(a.size) * a.dtype.itemsize for a in args[1:])
    stream_bytes = 2 * (TB * F_in * 2 + TB * out_pad * 4)   # double-buffered x + out
    bytes_accessed = int(x_bf.size * 2 + resident_bytes + B_pad * out_pad * 4)
    vmem_budget = int((resident_bytes + stream_bytes) * 3 // 2) + (4 << 20)
    vmem_budget = min(max(vmem_budget, 16 << 20), 64 << 20)  # clamp to v7x physical VMEM

    out = pl.pallas_call(
        _encoder_kernel,
        out_shape=jax.ShapeDtypeStruct((B_pad, out_pad), jnp.float32),
        grid=grid,
        in_specs=in_specs,
        out_specs=pl.BlockSpec((TB, out_pad), lambda i: (i, 0)),
        compiler_params=pltpu.CompilerParams(
            dimension_semantics=("parallel",),      # shards batch across v7x's 2 TCs
            vmem_limit_bytes=vmem_budget),
        cost_estimate=pl.CostEstimate(
            flops=flops, transcendentals=0, bytes_accessed=bytes_accessed),
    )(*args)

    mu = out[:B, :latent_dims]
    log_var = out[:B, latent_dims:out_dim]
    return mu, log_var


def init_params(key, input_size, latent_dims):
    """Deterministic synthetic init. Weights stored (in, out) f32; biases (1, out) f32."""
    sizes = [(input_size, 512), (512, 256), (256, 128),
             (128, 64), (64, 32), (32, latent_dims), (32, latent_dims)]
    params = {}
    for idx, (fin, fout) in enumerate(sizes, start=1):
        key, kw, kb = jax.random.split(key, 3)
        scale = 1.0 / jnp.sqrt(jnp.float32(fin))
        params[f"w{idx}"] = jax.random.normal(kw, (fin, fout), jnp.float32) * scale
        params[f"b{idx}"] = jax.random.normal(kb, (1, fout), jnp.float32) * scale
    return params


if __name__ == "__main__":
    # Small deterministic example: x is (B=2, C=4, H=16, W=16) -> input_size = 1024.
    B, C, H, W = 2, 4, 16, 16
    input_size = C * H * W
    latent_dims = 16

    key = jax.random.PRNGKey(0)
    key, kx = jax.random.split(key)
    x = jax.random.normal(kx, (B, C, H, W), jnp.float32)

    params = init_params(key, input_size, latent_dims)

    mu, log_var = encoder6layers_forward(x, params)
    jax.block_until_ready((mu, log_var))

    # Pure-JAX reference with the SAME bf16 dot / f32-accumulate math.
    hb = x.reshape(B, -1).astype(jnp.bfloat16)
    for i in range(1, 6):
        wb = params[f"w{i}"].astype(jnp.bfloat16)
        y = jnp.dot(hb, wb, preferred_element_type=jnp.float32) + params[f"b{i}"]
        hb = jnp.maximum(y, 0.0).astype(jnp.bfloat16)
    w67b = jnp.concatenate([params["w6"], params["w7"]], axis=1).astype(jnp.bfloat16)
    b67r = jnp.concatenate([params["b6"], params["b7"]], axis=1)
    ref = jnp.dot(hb, w67b, preferred_element_type=jnp.float32) + b67r
    mu_ref, lv_ref = ref[:, :latent_dims], ref[:, latent_dims:]

    assert mu.shape == (B, latent_dims) and log_var.shape == (B, latent_dims)
    assert jnp.allclose(mu, mu_ref, atol=2e-2, rtol=2e-2)
    assert jnp.allclose(log_var, lv_ref, atol=2e-2, rtol=2e-2)

    print("KERNEL_OK")
</pallas_src>

<mosaic_0001>
module attributes {stable_mosaic.version = 11 : i64} {
  func.func @_encoder_kernel(%arg0: i32, %arg1: memref<8x1024xbf16, #tpu.memory_space<vmem>>, %arg2: memref<1024x512xbf16, #tpu.memory_space<vmem>>, %arg3: memref<1x512xf32, #tpu.memory_space<vmem>>, %arg4: memref<512x256xbf16, #tpu.memory_space<vmem>>, %arg5: memref<1x256xf32, #tpu.memory_space<vmem>>, %arg6: memref<256x128xbf16, #tpu.memory_space<vmem>>, %arg7: memref<1x128xf32, #tpu.memory_space<vmem>>, %arg8: memref<128x64xbf16, #tpu.memory_space<vmem>>, %arg9: memref<1x64xf32, #tpu.memory_space<vmem>>, %arg10: memref<64x32xbf16, #tpu.memory_space<vmem>>, %arg11: memref<1x32xf32, #tpu.memory_space<vmem>>, %arg12: memref<32x128xbf16, #tpu.memory_space<vmem>>, %arg13: memref<1x128xf32, #tpu.memory_space<vmem>>, %arg14: memref<8x128xf32, #tpu.memory_space<vmem>>) attributes {dimension_semantics = [#tpu.dimension_semantics<parallel>], iteration_bounds = array<i64: 1>, scalar_prefetch = 0 : i64, scratch_operands = 0 : i64, tpu.core_type = #tpu.core_type<tc>, window_params = [{transform_indices = @transform_0, window_bounds = array<i64: 8, 1024>}, {pipeline_mode = #tpu.pipeline_mode<synchronous>, transform_indices = @transform_1, window_bounds = array<i64: 1024, 512>}, {pipeline_mode = #tpu.pipeline_mode<synchronous>, transform_indices = @transform_2, window_bounds = array<i64: 1, 512>}, {pipeline_mode = #tpu.pipeline_mode<synchronous>, transform_indices = @transform_3, window_bounds = array<i64: 512, 256>}, {pipeline_mode = #tpu.pipeline_mode<synchronous>, transform_indices = @transform_4, window_bounds = array<i64: 1, 256>}, {pipeline_mode = #tpu.pipeline_mode<synchronous>, transform_indices = @transform_5, window_bounds = array<i64: 256, 128>}, {pipeline_mode = #tpu.pipeline_mode<synchronous>, transform_indices = @transform_6, window_bounds = array<i64: 1, 128>}, {pipeline_mode = #tpu.pipeline_mode<synchronous>, transform_indices = @transform_7, window_bounds = array<i64: 128, 64>}, {pipeline_mode = #tpu.pipeline_mode<synchronous>, transform_indices = @transform_8, window_bounds = array<i64: 1, 64>}, {pipeline_mode = #tpu.pipeline_mode<synchronous>, transform_indices = @transform_9, window_bounds = array<i64: 64, 32>}, {pipeline_mode = #tpu.pipeline_mode<synchronous>, transform_indices = @transform_10, window_bounds = array<i64: 1, 32>}, {pipeline_mode = #tpu.pipeline_mode<synchronous>, transform_indices = @transform_11, window_bounds = array<i64: 32, 128>}, {pipeline_mode = #tpu.pipeline_mode<synchronous>, transform_indices = @transform_12, window_bounds = array<i64: 1, 128>}, {transform_indices = @transform_13, window_bounds = array<i64: 8, 128>}]} {
    %c0 = arith.constant 0 : index
    %c0_0 = arith.constant 0 : index
    %0 = vector.load %arg1[%c0, %c0_0] : memref<8x1024xbf16, #tpu.memory_space<vmem>>, vector<8x1024xbf16>
    %c0_1 = arith.constant 0 : index
    %c0_2 = arith.constant 0 : index
    %1 = vector.load %arg2[%c0_1, %c0_2] : memref<1024x512xbf16, #tpu.memory_space<vmem>>, vector<1024x512xbf16>
    %cst = arith.constant dense<0.000000e+00> : vector<8x512xf32>
    %2 = tpu.matmul %0, %1, %cst {dimension_numbers = #tpu.dot_dimension_numbers<[1], [0], [0], [1], [0, 0, 1, 1], [], []>} : vector<8x1024xbf16>, vector<1024x512xbf16>, vector<8x512xf32> -> vector<8x512xf32>
    %c0_3 = arith.constant 0 : index
    %c0_4 = arith.constant 0 : index
    %3 = vector.load %arg3[%c0_3, %c0_4] : memref<1x512xf32, #tpu.memory_space<vmem>>, vector<1x512xf32>
    %4 = vector.broadcast %3 : vector<1x512xf32> to vector<8x512xf32>
    %5 = arith.addf %2, %4 : vector<8x512xf32>
    %cst_5 = arith.constant 0.000000e+00 : f32
    %6 = vector.broadcast %cst_5 : f32 to vector<8x512xf32>
    %7 = arith.maximumf %5, %6 : vector<8x512xf32>
    %8 = arith.truncf %7 : vector<8x512xf32> to vector<8x512xbf16>
    %c0_6 = arith.constant 0 : index
    %c0_7 = arith.constant 0 : index
    %9 = vector.load %arg4[%c0_6, %c0_7] : memref<512x256xbf16, #tpu.memory_space<vmem>>, vector<512x256xbf16>
    %cst_8 = arith.constant dense<0.000000e+00> : vector<8x256xf32>
    %10 = tpu.matmul %8, %9, %cst_8 {dimension_numbers = #tpu.dot_dimension_numbers<[1], [0], [0], [1], [0, 0, 1, 1], [], []>} : vector<8x512xbf16>, vector<512x256xbf16>, vector<8x256xf32> -> vector<8x256xf32>
    %c0_9 = arith.constant 0 : index
    %c0_10 = arith.constant 0 : index
    %11 = vector.load %arg5[%c0_9, %c0_10] : memref<1x256xf32, #tpu.memory_space<vmem>>, vector<1x256xf32>
    %12 = vector.broadcast %11 : vector<1x256xf32> to vector<8x256xf32>
    %13 = arith.addf %10, %12 : vector<8x256xf32>
    %cst_11 = arith.constant 0.000000e+00 : f32
    %14 = vector.broadcast %cst_11 : f32 to vector<8x256xf32>
    %15 = arith.maximumf %13, %14 : vector<8x256xf32>
    %16 = arith.truncf %15 : vector<8x256xf32> to vector<8x256xbf16>
    %c0_12 = arith.constant 0 : index
    %c0_13 = arith.constant 0 : index
    %17 = vector.load %arg6[%c0_12, %c0_13] : memref<256x128xbf16, #tpu.memory_space<vmem>>, vector<256x128xbf16>
    %cst_14 = arith.constant dense<0.000000e+00> : vector<8x128xf32>
    %18 = tpu.matmul %16, %17, %cst_14 {dimension_numbers = #tpu.dot_dimension_numbers<[1], [0], [0], [1], [0, 0, 1, 1], [], []>} : vector<8x256xbf16>, vector<256x128xbf16>, vector<8x128xf32> -> vector<8x128xf32>
    %c0_15 = arith.constant 0 : index
    %c0_16 = arith.constant 0 : index
    %19 = vector.load %arg7[%c0_15, %c0_16] : memref<1x128xf32, #tpu.memory_space<vmem>>, vector<1x128xf32>
    %20 = vector.broadcast %19 : vector<1x128xf32> to vector<8x128xf32>
    %21 = arith.addf %18, %20 : vector<8x128xf32>
    %cst_17 = arith.constant 0.000000e+00 : f32
    %22 = vector.broadcast %cst_17 : f32 to vector<8x128xf32>
    %23 = arith.maximumf %21, %22 : vector<8x128xf32>
    %24 = arith.truncf %23 : vector<8x128xf32> to vector<8x128xbf16>
    %c0_18 = arith.constant 0 : index
    %c0_19 = arith.constant 0 : index
    %25 = vector.load %arg8[%c0_18, %c0_19] : memref<128x64xbf16, #tpu.memory_space<vmem>>, vector<128x64xbf16>
    %cst_20 = arith.constant dense<0.000000e+00> : vector<8x64xf32>
    %26 = tpu.matmul %24, %25, %cst_20 {dimension_numbers = #tpu.dot_dimension_numbers<[1], [0], [0], [1], [0, 0, 1, 1], [], []>} : vector<8x128xbf16>, vector<128x64xbf16>, vector<8x64xf32> -> vector<8x64xf32>
    %c0_21 = arith.constant 0 : index
    %c0_22 = arith.constant 0 : index
    %27 = vector.load %arg9[%c0_21, %c0_22] : memref<1x64xf32, #tpu.memory_space<vmem>>, vector<1x64xf32>
    %28 = vector.broadcast %27 : vector<1x64xf32> to vector<8x64xf32>
    %29 = arith.addf %26, %28 : vector<8x64xf32>
    %cst_23 = arith.constant 0.000000e+00 : f32
    %30 = vector.broadcast %cst_23 : f32 to vector<8x64xf32>
    %31 = arith.maximumf %29, %30 : vector<8x64xf32>
    %32 = arith.truncf %31 : vector<8x64xf32> to vector<8x64xbf16>
    %c0_24 = arith.constant 0 : index
    %c0_25 = arith.constant 0 : index
    %33 = vector.load %arg10[%c0_24, %c0_25] : memref<64x32xbf16, #tpu.memory_space<vmem>>, vector<64x32xbf16>
    %cst_26 = arith.constant dense<0.000000e+00> : vector<8x32xf32>
    %34 = tpu.matmul %32, %33, %cst_26 {dimension_numbers = #tpu.dot_dimension_numbers<[1], [0], [0], [1], [0, 0, 1, 1], [], []>} : vector<8x64xbf16>, vector<64x32xbf16>, vector<8x32xf32> -> vector<8x32xf32>
    %c0_27 = arith.constant 0 : index
    %c0_28 = arith.constant 0 : index
    %35 = vector.load %arg11[%c0_27, %c0_28] : memref<1x32xf32, #tpu.memory_space<vmem>>, vector<1x32xf32>
    %36 = vector.broadcast %35 : vector<1x32xf32> to vector<8x32xf32>
    %37 = arith.addf %34, %36 : vector<8x32xf32>
    %cst_29 = arith.constant 0.000000e+00 : f32
    %38 = vector.broadcast %cst_29 : f32 to vector<8x32xf32>
    %39 = arith.maximumf %37, %38 : vector<8x32xf32>
    %40 = arith.truncf %39 : vector<8x32xf32> to vector<8x32xbf16>
    %c0_30 = arith.constant 0 : index
    %c0_31 = arith.constant 0 : index
    %41 = vector.load %arg12[%c0_30, %c0_31] : memref<32x128xbf16, #tpu.memory_space<vmem>>, vector<32x128xbf16>
    %cst_32 = arith.constant dense<0.000000e+00> : vector<8x128xf32>
    %42 = tpu.matmul %40, %41, %cst_32 {dimension_numbers = #tpu.dot_dimension_numbers<[1], [0], [0], [1], [0, 0, 1, 1], [], []>} : vector<8x32xbf16>, vector<32x128xbf16>, vector<8x128xf32> -> vector<8x128xf32>
    %c0_33 = arith.constant 0 : index
    %c0_34 = arith.constant 0 : index
    %43 = vector.load %arg13[%c0_33, %c0_34] : memref<1x128xf32, #tpu.memory_space<vmem>>, vector<1x128xf32>
    %44 = vector.broadcast %43 : vector<1x128xf32> to vector<8x128xf32>
    %45 = arith.addf %42, %44 : vector<8x128xf32>
    %c0_35 = arith.constant 0 : index
    %c0_36 = arith.constant 0 : index
    %46 = vector.load %arg14[%c0_35, %c0_36] : memref<8x128xf32, #tpu.memory_space<vmem>>, vector<8x128xf32>
    tpu.vector_store %arg14[%c0_35, %c0_36], %45 {strides = array<i32>} : memref<8x128xf32, #tpu.memory_space<vmem>>, vector<8x128xf32>,
    return
  }
  func.func @transform_0(%arg0: i32) -> (i32, i32) {
    %c0_i32 = arith.constant 0 : i32
    %c0_i32_0 = arith.constant 0 : i32
    return %arg0, %c0_i32 : i32, i32
  }
  func.func @transform_1(%arg0: i32) -> (i32, i32) {
    %c0_i32 = arith.constant 0 : i32
    %c0_i32_0 = arith.constant 0 : i32
    %c0_i32_1 = arith.constant 0 : i32
    return %c0_i32, %c0_i32_0 : i32, i32
  }
  func.func @transform_2(%arg0: i32) -> (i32, i32) {
    %c0_i32 = arith.constant 0 : i32
    %c0_i32_0 = arith.constant 0 : i32
    %c0_i32_1 = arith.constant 0 : i32
    return %c0_i32, %c0_i32_0 : i32, i32
  }
  func.func @transform_3(%arg0: i32) -> (i32, i32) {
    %c0_i32 = arith.constant 0 : i32
    %c0_i32_0 = arith.constant 0 : i32
    %c0_i32_1 = arith.constant 0 : i32
    return %c0_i32, %c0_i32_0 : i32, i32
  }
  func.func @transform_4(%arg0: i32) -> (i32, i32) {
    %c0_i32 = arith.constant 0 : i32
    %c0_i32_0 = arith.constant 0 : i32
    %c0_i32_1 = arith.constant 0 : i32
    return %c0_i32, %c0_i32_0 : i32, i32
  }
  func.func @transform_5(%arg0: i32) -> (i32, i32) {
    %c0_i32 = arith.constant 0 : i32
    %c0_i32_0 = arith.constant 0 : i32
    %c0_i32_1 = arith.constant 0 : i32
    return %c0_i32, %c0_i32_0 : i32, i32
  }
  func.func @transform_6(%arg0: i32) -> (i32, i32) {
    %c0_i32 = arith.constant 0 : i32
    %c0_i32_0 = arith.constant 0 : i32
    %c0_i32_1 = arith.constant 0 : i32
    return %c0_i32, %c0_i32_0 : i32, i32
  }
  func.func @transform_7(%arg0: i32) -> (i32, i32) {
    %c0_i32 = arith.constant 0 : i32
    %c0_i32_0 = arith.constant 0 : i32
    %c0_i32_1 = arith.constant 0 : i32
    return %c0_i32, %c0_i32_0 : i32, i32
  }
  func.func @transform_8(%arg0: i32) -> (i32, i32) {
    %c0_i32 = arith.constant 0 : i32
    %c0_i32_0 = arith.constant 0 : i32
    %c0_i32_1 = arith.constant 0 : i32
    return %c0_i32, %c0_i32_0 : i32, i32
  }
  func.func @transform_9(%arg0: i32) -> (i32, i32) {
    %c0_i32 = arith.constant 0 : i32
    %c0_i32_0 = arith.constant 0 : i32
    %c0_i32_1 = arith.constant 0 : i32
    return %c0_i32, %c0_i32_0 : i32, i32
  }
  func.func @transform_10(%arg0: i32) -> (i32, i32) {
    %c0_i32 = arith.constant 0 : i32
    %c0_i32_0 = arith.constant 0 : i32
    %c0_i32_1 = arith.constant 0 : i32
    return %c0_i32, %c0_i32_0 : i32, i32
  }
  func.func @transform_11(%arg0: i32) -> (i32, i32) {
    %c0_i32 = arith.constant 0 : i32
    %c0_i32_0 = arith.constant 0 : i32
    %c0_i32_1 = arith.constant 0 : i32
    return %c0_i32, %c0_i32_0 : i32, i32
  }
  func.func @transform_12(%arg0: i32) -> (i32, i32) {
    %c0_i32 = arith.constant 0 : i32
    %c0_i32_0 = arith.constant 0 : i32
    %c0_i32_1 = arith.constant 0 : i32
    return %c0_i32, %c0_i32_0 : i32, i32
  }
  func.func @transform_13(%arg0: i32) -> (i32, i32) {
    %c0_i32 = arith.constant 0 : i32
    %c0_i32_0 = arith.constant 0 : i32
    return %arg0, %c0_i32 : i32, i32
  }
}

</mosaic_0001>

<llo_original>
// kernel: tpu_custom_call.1
$region0: #{tpu_custom_call.1}
  #allocation0 [shape = 'u32[]', space=smem, size = 0x4, offset = 0x4, fixed_abs, tag = 'smem constant byte address 0x4 - core index']
  #allocation1 [shape = 'u32[144,128]{1,0:T(1,128)}', space=vmem, size = 0x12000, scoped, tag = 'internal scratch']
  %s0 = inlined_call_operand.hbm [shape: bf16[8,1024], index: 0, kind: input, shape index: {}]
  %s1 = inlined_call_operand.hbm [shape: bf16[1024,512], index: 1, kind: input, shape index: {}]
  %s2 = inlined_call_operand.hbm [shape: f32[1,512], index: 2, kind: input, shape index: {}]
  %s3 = inlined_call_operand.hbm [shape: bf16[512,256], index: 3, kind: input, shape index: {}]
  %s4 = inlined_call_operand.hbm [shape: f32[1,256], index: 4, kind: input, shape index: {}]
  %s5 = inlined_call_operand.vmem [shape: bf16[256,128], index: 5, kind: input, shape index: {}]
  %s6 = inlined_call_operand.hbm [shape: f32[1,128], index: 6, kind: input, shape index: {}]
  %s7 = inlined_call_operand.vmem [shape: bf16[128,64], index: 7, kind: input, shape index: {}]
  %s8 = inlined_call_operand.hbm [shape: f32[1,64], index: 8, kind: input, shape index: {}]
  %s9 = inlined_call_operand.vmem [shape: bf16[64,32], index: 9, kind: input, shape index: {}]
  %s10 = inlined_call_operand.vmem [shape: f32[1,32], index: 10, kind: input, shape index: {}]
  %s11 = inlined_call_operand.vmem [shape: bf16[32,128], index: 11, kind: input, shape index: {}]
  %s12 = inlined_call_operand.vmem [shape: f32[1,128], index: 12, kind: input, shape index: {}]
  %s13 = inlined_call_operand.hbm [shape: f32[8,128], index: 13, kind: output, shape index: {}]
  %s14 = sld [smem:[#allocation0]]
  $region90: #{tpu_custom_call.1} parent=0
    _
  %s16 = ssub.s32 1, %s14
  %s17 = scalar_select 0, %s16, %s14
  $region1: #{tpu_custom_call.1} parent=0
    #allocation2 [shape = 'u8[16384]{0}', space=vmem, size = 0x4000, scoped, tag = 'input window, operand 0, single buffered']
    #allocation3 [shape = 's32[1]{0}', space=sflag, size = 0x4, scoped, tag = 'scoped memory for tpu_custom_call.1']
    #allocation4 [shape = 's32[1]{0}', space=sflag, size = 0x4, scoped, tag = 'scoped memory for tpu_custom_call.1']
    #allocation5 [shape = 'u8[1048576]{0}', space=vmem, size = 0x100000, scoped, tag = 'input window, operand 1, single buffered']
    #allocation6 [shape = 's32[1]{0}', space=sflag, size = 0x4, scoped, tag = 'scoped memory for tpu_custom_call.1']
    #allocation7 [shape = 'u8[2048]{0}', space=vmem, size = 0x800, scoped, tag = 'input window, operand 2, single buffered']
    #allocation8 [shape = 'u8[262144]{0}', space=vmem, size = 0x40000, scoped, tag = 'input window, operand 3, single buffered']
    #allocation9 [shape = 's32[1]{0}', space=sflag, size = 0x4, scoped, tag = 'scoped memory for tpu_custom_call.1']
    #allocation10 [shape = 'u8[1024]{0}', space=vmem, size = 0x400, scoped, tag = 'input window, operand 4, single buffered']
    #allocation11 [shape = 'u8[512]{0}', space=vmem, size = 0x400, scoped, tag = 'input window, operand 6, single buffered']
    #allocation12 [shape = 's32[1]{0}', space=sflag, size = 0x4, scoped, tag = 'scoped memory for tpu_custom_call.1']
    #allocation13 [shape = 'u8[512]{0}', space=vmem, size = 0x400, scoped, tag = 'input window, operand 8, single buffered']
    #allocation14 [shape = 'u8[4096]{0}', space=vmem, size = 0x1000, scoped, tag = 'output window, operand 0, single buffered']
    %18 = vsyncpa [#allocation3], 0
    %19 = vsyncpa [#allocation6], 0
    %20 = vsyncpa [#allocation9], 0
    %21 = vsyncpa [#allocation12], 0
    %22 = vsyncpa [#allocation4], 0
    // Predicated region
    $region2: #{tpu_custom_call.1} parent=1 // pred_check
      _
    $region3: #{tpu_custom_call.1} parent=1 // pred_check_branch
      %24 = sbr.rel (0) target = $region5
    $region4: #{tpu_custom_call.1} parent=1 // pred_region
      %s26 = ssub.s32 512, 512
      %27 = vsyncadd [#allocation3], %s26
      %s29 = sshll.u32 [#allocation2], 4
      %s30 = int_to_ptr.vmem [resolvable:$true] %s29
      %32 = dma.hbm_to_vmem [thread:$0]  %s0, 512, %s30, [#allocation3]
    $region5: #{tpu_custom_call.1} parent=1 // pred_fallthru
      _
    // Predicated region
    $region6: #{tpu_custom_call.1} parent=1 // pred_check
      _
    $region7: #{tpu_custom_call.1} parent=1 // pred_check_branch
      %34 = sbr.rel (0) target = $region9
    $region8: #{tpu_custom_call.1} parent=1 // pred_region
      %s36 = ssub.s32 32768, 32768
      %37 = vsyncadd [#allocation6], %s36
      %s38 = sshll.u32 [#allocation5], 4
      %s39 = int_to_ptr.vmem [resolvable:$true] %s38
      %44 = dma.hbm_to_vmem [thread:$0]  %s1, 32768, %s39, [#allocation6], 256, 256, 16
    $region9: #{tpu_custom_call.1} parent=1 // pred_fallthru
      _
    // Predicated region
    $region10: #{tpu_custom_call.1} parent=1 // pred_check
      _
    $region11: #{tpu_custom_call.1} parent=1 // pred_check_branch
      %46 = sbr.rel (0) target = $region13
    $region12: #{tpu_custom_call.1} parent=1 // pred_region
      %s48 = ssub.s32 64, 64
      %49 = vsyncadd [#allocation6], %s48
      %s51 = sshll.u32 [#allocation7], 4
      %s52 = int_to_ptr.vmem [resolvable:$true] %s51
      %54 = dma.hbm_to_vmem [thread:$0]  %s2, 64, %s52, [#allocation6]
    $region13: #{tpu_custom_call.1} parent=1 // pred_fallthru
      _
    // Predicated region
    $region14: #{tpu_custom_call.1} parent=1 // pred_check
      _
    $region15: #{tpu_custom_call.1} parent=1 // pred_check_branch
      %56 = sbr.rel (0) target = $region17
    $region16: #{tpu_custom_call.1} parent=1 // pred_region
      %s58 = ssub.s32 8192, 8192
      %59 = vsyncadd [#allocation9], %s58
      %s60 = sshll.u32 [#allocation8], 4
      %s61 = int_to_ptr.vmem [resolvable:$true] %s60
      %66 = dma.hbm_to_vmem [thread:$0]  %s3, 8192, %s61, [#allocation9], 128, 128, 8
    $region17: #{tpu_custom_call.1} parent=1 // pred_fallthru
      _
    // Predicated region
    $region18: #{tpu_custom_call.1} parent=1 // pred_check
      _
    $region19: #{tpu_custom_call.1} parent=1 // pred_check_branch
      %68 = sbr.rel (0) target = $region21
    $region20: #{tpu_custom_call.1} parent=1 // pred_region
      %s70 = ssub.s32 32, 32
      %71 = vsyncadd [#allocation9], %s70
      %s73 = sshll.u32 [#allocation10], 4
      %s74 = int_to_ptr.vmem [resolvable:$true] %s73
      %76 = dma.hbm_to_vmem [thread:$0]  %s4, 32, %s74, [#allocation9]
    $region21: #{tpu_custom_call.1} parent=1 // pred_fallthru
      _
    // Predicated region
    $region22: #{tpu_custom_call.1} parent=1 // pred_check
      _
    $region23: #{tpu_custom_call.1} parent=1 // pred_check_branch
      %78 = sbr.rel (0) target = $region25
    $region24: #{tpu_custom_call.1} parent=1 // pred_region
      _
    $region25: #{tpu_custom_call.1} parent=1 // pred_fallthru
      _
    // Predicated region
    $region26: #{tpu_custom_call.1} parent=1 // pred_check
      _
    $region27: #{tpu_custom_call.1} parent=1 // pred_check_branch
      %80 = sbr.rel (0) target = $region29
    $region28: #{tpu_custom_call.1} parent=1 // pred_region
      %s82 = ssub.s32 16, 16
      %83 = vsyncadd [#allocation12], %s82
      %s85 = sshll.u32 [#allocation11], 4
      %s86 = int_to_ptr.vmem [resolvable:$true] %s85
      %88 = dma.hbm_to_vmem [thread:$0]  %s6, 16, %s86, [#allocation12]
    $region29: #{tpu_custom_call.1} parent=1 // pred_fallthru
      _
    // Predicated region
    $region30: #{tpu_custom_call.1} parent=1 // pred_check
      _
    $region31: #{tpu_custom_call.1} parent=1 // pred_check_branch
      %90 = sbr.rel (0) target = $region33
    $region32: #{tpu_custom_call.1} parent=1 // pred_region
      _
    $region33: #{tpu_custom_call.1} parent=1 // pred_fallthru
      _
    // Predicated region
    $region34: #{tpu_custom_call.1} parent=1 // pred_check
      _
    $region35: #{tpu_custom_call.1} parent=1 // pred_check_branch
      %92 = sbr.rel (0) target = $region37
    $region36: #{tpu_custom_call.1} parent=1 // pred_region
      %s94 = ssub.s32 16, 16
      %95 = vsyncadd [#allocation12], %s94
      %s97 = sshll.u32 [#allocation13], 4
      %s98 = int_to_ptr.vmem [resolvable:$true] %s97
      %100 = dma.hbm_to_vmem [thread:$0]  %s8, 16, %s98, [#allocation12]
    $region37: #{tpu_custom_call.1} parent=1 // pred_fallthru
      _
    // Predicated region
    $region38: #{tpu_custom_call.1} parent=1 // pred_check
      _
    $region39: #{tpu_custom_call.1} parent=1 // pred_check_branch
      %102 = sbr.rel (0) target = $region41
    $region40: #{tpu_custom_call.1} parent=1 // pred_region
      _
    $region41: #{tpu_custom_call.1} parent=1 // pred_fallthru
      _
    // Predicated region
    $region42: #{tpu_custom_call.1} parent=1 // pred_check
      _
    $region43: #{tpu_custom_call.1} parent=1 // pred_check_branch
      %104 = sbr.rel (0) target = $region45
    $region44: #{tpu_custom_call.1} parent=1 // pred_region
      _
    $region45: #{tpu_custom_call.1} parent=1 // pred_fallthru
      _
    // Predicated region
    $region46: #{tpu_custom_call.1} parent=1 // pred_check
      _
    $region47: #{tpu_custom_call.1} parent=1 // pred_check_branch
      %106 = sbr.rel (0) target = $region49
    $region48: #{tpu_custom_call.1} parent=1 // pred_region
      _
    $region49: #{tpu_custom_call.1} parent=1 // pred_fallthru
      _
    // Predicated region
    $region50: #{tpu_custom_call.1} parent=1 // pred_check
      _
    $region51: #{tpu_custom_call.1} parent=1 // pred_check_branch
      %108 = sbr.rel (0) target = $region53
    $region52: #{tpu_custom_call.1} parent=1 // pred_region
      _
    $region53: #{tpu_custom_call.1} parent=1 // pred_fallthru
      _
    // Predicated region
    $region54: #{tpu_custom_call.1} parent=1 // pred_check
      _
    $region55: #{tpu_custom_call.1} parent=1 // pred_check_branch
      %110 = sbr.rel (0) target = $region57
    $region56: #{tpu_custom_call.1} parent=1 // pred_region
      %111 = dma.done [#allocation3], 512
    $region57: #{tpu_custom_call.1} parent=1 // pred_fallthru
      _
    // Predicated region
    $region58: #{tpu_custom_call.1} parent=1 // pred_check
      _
    $region59: #{tpu_custom_call.1} parent=1 // pred_check_branch
      %113 = sbr.rel (0) target = $region61
    $region60: #{tpu_custom_call.1} parent=1 // pred_region
      %114 = dma.done [#allocation6], 32768
    $region61: #{tpu_custom_call.1} parent=1 // pred_fallthru
      _
    // Predicated region
    $region62: #{tpu_custom_call.1} parent=1 // pred_check
      _
    $region63: #{tpu_custom_call.1} parent=1 // pred_check_branch
      %116 = sbr.rel (0) target = $region65
    $region64: #{tpu_custom_call.1} parent=1 // pred_region
      %117 = dma.done [#allocation6], 64
    $region65: #{tpu_custom_call.1} parent=1 // pred_fallthru
      _
    // Predicated region
    $region66: #{tpu_custom_call.1} parent=1 // pred_check
      _
    $region67: #{tpu_custom_call.1} parent=1 // pred_check_branch
      %119 = sbr.rel (0) target = $region69
    $region68: #{tpu_custom_call.1} parent=1 // pred_region
      %120 = dma.done [#allocation9], 8192
    $region69: #{tpu_custom_call.1} parent=1 // pred_fallthru
      _
    // Predicated region
    $region70: #{tpu_custom_call.1} parent=1 // pred_check
      _
    $region71: #{tpu_custom_call.1} parent=1 // pred_check_branch
      %122 = sbr.rel (0) target = $region73
    $region72: #{tpu_custom_call.1} parent=1 // pred_region
      %123 = dma.done [#allocation9], 32
    $region73: #{tpu_custom_call.1} parent=1 // pred_fallthru
      _
    // Predicated region
    $region74: #{tpu_custom_call.1} parent=1 // pred_check
      _
    $region75: #{tpu_custom_call.1} parent=1 // pred_check_branch
      %125 = sbr.rel (0) target = $region77
    $region76: #{tpu_custom_call.1} parent=1 // pred_region
      %126 = dma.done [#allocation12], 16
    $region77: #{tpu_custom_call.1} parent=1 // pred_fallthru
      _
    // Predicated region
    $region78: #{tpu_custom_call.1} parent=1 // pred_check
      _
    $region79: #{tpu_custom_call.1} parent=1 // pred_check_branch
      %128 = sbr.rel (0) target = $region81
    $region80: #{tpu_custom_call.1} parent=1 // pred_region
      %129 = dma.done [#allocation12], 16
    $region81: #{tpu_custom_call.1} parent=1 // pred_fallthru
      _
    %v131 = vld [vmem:[#allocation2] sm:$0xff]
    %v132 = vld [vmem:[#allocation2 + $0x8] sm:$0xff]
    %v133 = vld [vmem:[#allocation2 + $0x10] sm:$0xff]
    %v134 = vld [vmem:[#allocation2 + $0x18] sm:$0xff]
    %v135 = vld [vmem:[#allocation5] sm:$0xff]
    %v136 = vld [vmem:[#allocation5 + $0x8] sm:$0xff]
    %v137 = vld [vmem:[#allocation5 + $0x10] sm:$0xff]
    %v138 = vld [vmem:[#allocation5 + $0x18] sm:$0xff]
    %v139 = vld [vmem:[#allocation5 + $0x20] sm:$0xff]
    %v140 = vld [vmem:[#allocation5 + $0x28] sm:$0xff]
    %v141 = vld [vmem:[#allocation5 + $0x30] sm:$0xff]
    %v142 = vld [vmem:[#allocation5 + $0x38] sm:$0xff]
    %v143 = vld [vmem:[#allocation5 + $0x40] sm:$0xff]
    %v144 = vld [vmem:[#allocation5 + $0x48] sm:$0xff]
    %v145 = vld [vmem:[#allocation5 + $0x50] sm:$0xff]
    %v146 = vld [vmem:[#allocation5 + $0x58] sm:$0xff]
    %v147 = vld [vmem:[#allocation5 + $0x60] sm:$0xff]
    %v148 = vld [vmem:[#allocation5 + $0x68] sm:$0xff]
    %v149 = vld [vmem:[#allocation5 + $0x70] sm:$0xff]
    %v150 = vld [vmem:[#allocation5 + $0x78] sm:$0xff]
    %v151 = vld [vmem:[#allocation5 + $0x80] sm:$0xff]
    %v152 = vld [vmem:[#allocation5 + $0x88] sm:$0xff]
    %v153 = vld [vmem:[#allocation5 + $0x90] sm:$0xff]
    %v154 = vld [vmem:[#allocation5 + $0x98] sm:$0xff]
    %v155 = vld [vmem:[#allocation5 + $0xa0] sm:$0xff]
    %v156 = vld [vmem:[#allocation5 + $0xa8] sm:$0xff]
    %v157 = vld [vmem:[#allocation5 + $0xb0] sm:$0xff]
    %v158 = vld [vmem:[#allocation5 + $0xb8] sm:$0xff]
    %v159 = vld [vmem:[#allocation5 + $0xc0] sm:$0xff]
    %v160 = vld [vmem:[#allocation5 + $0xc8] sm:$0xff]
    %v161 = vld [vmem:[#allocation5 + $0xd0] sm:$0xff]
    %v162 = vld [vmem:[#allocation5 + $0xd8] sm:$0xff]
    %v163 = vld [vmem:[#allocation5 + $0xe0] sm:$0xff]
    %v164 = vld [vmem:[#allocation5 + $0xe8] sm:$0xff]
    %v165 = vld [vmem:[#allocation5 + $0xf0] sm:$0xff]
    %v166 = vld [vmem:[#allocation5 + $0xf8] sm:$0xff]
    %v167 = vld [vmem:[#allocation5 + $0x100] sm:$0xff]
    %v168 = vld [vmem:[#allocation5 + $0x108] sm:$0xff]
    %v169 = vld [vmem:[#allocation5 + $0x110] sm:$0xff]
    %v170 = vld [vmem:[#allocation5 + $0x118] sm:$0xff]
    %v171 = vld [vmem:[#allocation5 + $0x120] sm:$0xff]
    %v172 = vld [vmem:[#allocation5 + $0x128] sm:$0xff]
    %v173 = vld [vmem:[#allocation5 + $0x130] sm:$0xff]
    %v174 = vld [vmem:[#allocation5 + $0x138] sm:$0xff]
    %v175 = vld [vmem:[#allocation5 + $0x140] sm:$0xff]
    %v176 = vld [vmem:[#allocation5 + $0x148] sm:$0xff]
    %v177 = vld [vmem:[#allocation5 + $0x150] sm:$0xff]
    %v178 = vld [vmem:[#allocation5 + $0x158] sm:$0xff]
    %v179 = vld [vmem:[#allocation5 + $0x160] sm:$0xff]
    %v180 = vld [vmem:[#allocation5 + $0x168] sm:$0xff]
    %v181 = vld [vmem:[#allocation5 + $0x170] sm:$0xff]
    %v182 = vld [vmem:[#allocation5 + $0x178] sm:$0xff]
    %v183 = vld [vmem:[#allocation5 + $0x180] sm:$0xff]
    %v184 = vld [vmem:[#allocation5 + $0x188] sm:$0xff]
    %v185 = vld [vmem:[#allocation5 + $0x190] sm:$0xff]
    %v186 = vld [vmem:[#allocation5 + $0x198] sm:$0xff]
    %v187 = vld [vmem:[#allocation5 + $0x1a0] sm:$0xff]
    %v188 = vld [vmem:[#allocation5 + $0x1a8] sm:$0xff]
    %v189 = vld [vmem:[#allocation5 + $0x1b0] sm:$0xff]
    %v190 = vld [vmem:[#allocation5 + $0x1b8] sm:$0xff]
    %v191 = vld [vmem:[#allocation5 + $0x1c0] sm:$0xff]
    %v192 = vld [vmem:[#allocation5 + $0x1c8] sm:$0xff]
    %v193 = vld [vmem:[#allocation5 + $0x1d0] sm:$0xff]
    %v194 = vld [vmem:[#allocation5 + $0x1d8] sm:$0xff]
    %v195 = vld [vmem:[#allocation5 + $0x1e0] sm:$0xff]
    %v196 = vld [vmem:[#allocation5 + $0x1e8] sm:$0xff]
    %v197 = vld [vmem:[#allocation5 + $0x1f0] sm:$0xff]
    %v198 = vld [vmem:[#allocation5 + $0x1f8] sm:$0xff]
    %v199 = vld [vmem:[#allocation5 + $0x200] sm:$0xff]
    %v200 = vld [vmem:[#allocation5 + $0x208] sm:$0xff]
    %v201 = vld [vmem:[#allocation5 + $0x210] sm:$0xff]
    %v202 = vld [vmem:[#allocation5 + $0x218] sm:$0xff]
    %v203 = vld [vmem:[#allocation5 + $0x220] sm:$0xff]
    %v204 = vld [vmem:[#allocation5 + $0x228] sm:$0xff]
    %v205 = vld [vmem:[#allocation5 + $0x230] sm:$0xff]
    %v206 = vld [vmem:[#allocation5 + $0x238] sm:$0xff]
    %v207 = vld [vmem:[#allocation5 + $0x240] sm:$0xff]
    %v208 = vld [vmem:[#allocation5 + $0x248] sm:$0xff]
    %v209 = vld [vmem:[#allocation5 + $0x250] sm:$0xff]
    %v210 = vld [vmem:[#allocation5 + $0x258] sm:$0xff]
    %v211 = vld [vmem:[#allocation5 + $0x260] sm:$0xff]
    %v212 = vld [vmem:[#allocation5 + $0x268] sm:$0xff]
    %v213 = vld [vmem:[#allocation5 + $0x270] sm:$0xff]
    %v214 = vld [vmem:[#allocation5 + $0x278] sm:$0xff]
    %v215 = vld [vmem:[#allocation5 + $0x280] sm:$0xff]
    %v216 = vld [vmem:[#allocation5 + $0x288] sm:$0xff]
    %v217 = vld [vmem:[#allocation5 + $0x290] sm:$0xff]
    %v218 = vld [vmem:[#allocation5 + $0x298] sm:$0xff]
    %v219 = vld [vmem:[#allocation5 + $0x2a0] sm:$0xff]
    %v220 = vld [vmem:[#allocation5 + $0x2a8] sm:$0xff]
    %v221 = vld [vmem:[#allocation5 + $0x2b0] sm:$0xff]
    %v222 = vld [vmem:[#allocation5 + $0x2b8] sm:$0xff]
    %v223 = vld [vmem:[#allocation5 + $0x2c0] sm:$0xff]
    %v224 = vld [vmem:[#allocation5 + $0x2c8] sm:$0xff]
    %v225 = vld [vmem:[#allocation5 + $0x2d0] sm:$0xff]
    %v226 = vld [vmem:[#allocation5 + $0x2d8] sm:$0xff]
    %v227 = vld [vmem:[#allocation5 + $0x2e0] sm:$0xff]
    %v228 = vld [vmem:[#allocation5 + $0x2e8] sm:$0xff]
    %v229 = vld [vmem:[#allocation5 + $0x2f0] sm:$0xff]
    %v230 = vld [vmem:[#allocation5 + $0x2f8] sm:$0xff]
    %v231 = vld [vmem:[#allocation5 + $0x300] sm:$0xff]
    %v232 = vld [vmem:[#allocation5 + $0x308] sm:$0xff]
    %v233 = vld [vmem:[#allocation5 + $0x310] sm:$0xff]
    %v234 = vld [vmem:[#allocation5 + $0x318] sm:$0xff]
    %v235 = vld [vmem:[#allocation5 + $0x320] sm:$0xff]
    %v236 = vld [vmem:[#allocation5 + $0x328] sm:$0xff]
    %v237 = vld [vmem:[#allocation5 + $0x330] sm:$0xff]
    %v238 = vld [vmem:[#allocation5 + $0x338] sm:$0xff]
    %v239 = vld [vmem:[#allocation5 + $0x340] sm:$0xff]
    %v240 = vld [vmem:[#allocation5 + $0x348] sm:$0xff]
    %v241 = vld [vmem:[#allocation5 + $0x350] sm:$0xff]
    %v242 = vld [vmem:[#allocation5 + $0x358] sm:$0xff]
    %v243 = vld [vmem:[#allocation5 + $0x360] sm:$0xff]
    %v244 = vld [vmem:[#allocation5 + $0x368] sm:$0xff]
    %v245 = vld [vmem:[#allocation5 + $0x370] sm:$0xff]
    %v246 = vld [vmem:[#allocation5 + $0x378] sm:$0xff]
    %v247 = vld [vmem:[#allocation5 + $0x380] sm:$0xff]
    %v248 = vld [vmem:[#allocation5 + $0x388] sm:$0xff]
    %v249 = vld [vmem:[#allocation5 + $0x390] sm:$0xff]
    %v250 = vld [vmem:[#allocation5 + $0x398] sm:$0xff]
    %v251 = vld [vmem:[#allocation5 + $0x3a0] sm:$0xff]
    %v252 = vld [vmem:[#allocation5 + $0x3a8] sm:$0xff]
    %v253 = vld [vmem:[#allocation5 + $0x3b0] sm:$0xff]
    %v254 = vld [vmem:[#allocation5 + $0x3b8] sm:$0xff]
    %v255 = vld [vmem:[#allocation5 + $0x3c0] sm:$0xff]
    %v256 = vld [vmem:[#allocation5 + $0x3c8] sm:$0xff]
    %v257 = vld [vmem:[#allocation5 + $0x3d0] sm:$0xff]
    %v258 = vld [vmem:[#allocation5 + $0x3d8] sm:$0xff]
    %v259 = vld [vmem:[#allocation5 + $0x3e0] sm:$0xff]
    %v260 = vld [vmem:[#allocation5 + $0x3e8] sm:$0xff]
    %v261 = vld [vmem:[#allocation5 + $0x3f0] sm:$0xff]
    %v262 = vld [vmem:[#allocation5 + $0x3f8] sm:$0xff]
    %v263 = vld [vmem:[#allocation5 + $0x400] sm:$0xff]
    %v264 = vld [vmem:[#allocation5 + $0x408] sm:$0xff]
    %v265 = vld [vmem:[#allocation5 + $0x410] sm:$0xff]
    %v266 = vld [vmem:[#allocation5 + $0x418] sm:$0xff]
    %v267 = vld [vmem:[#allocation5 + $0x420] sm:$0xff]
    %v268 = vld [vmem:[#allocation5 + $0x428] sm:$0xff]
    %v269 = vld [vmem:[#allocation5 + $0x430] sm:$0xff]
    %v270 = vld [vmem:[#allocation5 + $0x438] sm:$0xff]
    %v271 = vld [vmem:[#allocation5 + $0x440] sm:$0xff]
    %v272 = vld [vmem:[#allocation5 + $0x448] sm:$0xff]
    %v273 = vld [vmem:[#allocation5 + $0x450] sm:$0xff]
    %v274 = vld [vmem:[#allocation5 + $0x458] sm:$0xff]
    %v275 = vld [vmem:[#allocation5 + $0x460] sm:$0xff]
    %v276 = vld [vmem:[#allocation5 + $0x468] sm:$0xff]
    %v277 = vld [vmem:[#allocation5 + $0x470] sm:$0xff]
    %v278 = vld [vmem:[#allocation5 + $0x478] sm:$0xff]
    %v279 = vld [vmem:[#allocation5 + $0x480] sm:$0xff]
    %v280 = vld [vmem:[#allocation5 + $0x488] sm:$0xff]
    %v281 = vld [vmem:[#allocation5 + $0x490] sm:$0xff]
    %v282 = vld [vmem:[#allocation5 + $0x498] sm:$0xff]
    %v283 = vld [vmem:[#allocation5 + $0x4a0] sm:$0xff]
    %v284 = vld [vmem:[#allocation5 + $0x4a8] sm:$0xff]
    %v285 = vld [vmem:[#allocation5 + $0x4b0] sm:$0xff]
    %v286 = vld [vmem:[#allocation5 + $0x4b8] sm:$0xff]
    %v287 = vld [vmem:[#allocation5 + $0x4c0] sm:$0xff]
    %v288 = vld [vmem:[#allocation5 + $0x4c8] sm:$0xff]
    %v289 = vld [vmem:[#allocation5 + $0x4d0] sm:$0xff]
    %v290 = vld [vmem:[#allocation5 + $0x4d8] sm:$0xff]
    %v291 = vld [vmem:[#allocation5 + $0x4e0] sm:$0xff]
    %v292 = vld [vmem:[#allocation5 + $0x4e8] sm:$0xff]
    %v293 = vld [vmem:[#allocation5 + $0x4f0] sm:$0xff]
    %v294 = vld [vmem:[#allocation5 + $0x4f8] sm:$0xff]
    %v295 = vld [vmem:[#allocation5 + $0x500] sm:$0xff]
    %v296 = vld [vmem:[#allocation5 + $0x508] sm:$0xff]
    %v297 = vld [vmem:[#allocation5 + $0x510] sm:$0xff]
    %v298 = vld [vmem:[#allocation5 + $0x518] sm:$0xff]
    %v299 = vld [vmem:[#allocation5 + $0x520] sm:$0xff]
    %v300 = vld [vmem:[#allocation5 + $0x528] sm:$0xff]
    %v301 = vld [vmem:[#allocation5 + $0x530] sm:$0xff]
    %v302 = vld [vmem:[#allocation5 + $0x538] sm:$0xff]
    %v303 = vld [vmem:[#allocation5 + $0x540] sm:$0xff]
    %v304 = vld [vmem:[#allocation5 + $0x548] sm:$0xff]
    %v305 = vld [vmem:[#allocation5 + $0x550] sm:$0xff]
    %v306 = vld [vmem:[#allocation5 + $0x558] sm:$0xff]
    %v307 = vld [vmem:[#allocation5 + $0x560] sm:$0xff]
    %v308 = vld [vmem:[#allocation5 + $0x568] sm:$0xff]
    %v309 = vld [vmem:[#allocation5 + $0x570] sm:$0xff]
    %v310 = vld [vmem:[#allocation5 + $0x578] sm:$0xff]
    %v311 = vld [vmem:[#allocation5 + $0x580] sm:$0xff]
    %v312 = vld [vmem:[#allocation5 + $0x588] sm:$0xff]
    %v313 = vld [vmem:[#allocation5 + $0x590] sm:$0xff]
    %v314 = vld [vmem:[#allocation5 + $0x598] sm:$0xff]
    %v315 = vld [vmem:[#allocation5 + $0x5a0] sm:$0xff]
    %v316 = vld [vmem:[#allocation5 + $0x5a8] sm:$0xff]
    %v317 = vld [vmem:[#allocation5 + $0x5b0] sm:$0xff]
    %v318 = vld [vmem:[#allocation5 + $0x5b8] sm:$0xff]
    %v319 = vld [vmem:[#allocation5 + $0x5c0] sm:$0xff]
    %v320 = vld [vmem:[#allocation5 + $0x5c8] sm:$0xff]
    %v321 = vld [vmem:[#allocation5 + $0x5d0] sm:$0xff]
    %v322 = vld [vmem:[#allocation5 + $0x5d8] sm:$0xff]
    %v323 = vld [vmem:[#allocation5 + $0x5e0] sm:$0xff]
    %v324 = vld [vmem:[#allocation5 + $0x5e8] sm:$0xff]
    %v325 = vld [vmem:[#allocation5 + $0x5f0] sm:$0xff]
    %v326 = vld [vmem:[#allocation5 + $0x5f8] sm:$0xff]
    %v327 = vld [vmem:[#allocation5 + $0x600] sm:$0xff]
    %v328 = vld [vmem:[#allocation5 + $0x608] sm:$0xff]
    %v329 = vld [vmem:[#allocation5 + $0x610] sm:$0xff]
    %v330 = vld [vmem:[#allocation5 + $0x618] sm:$0xff]
    %v331 = vld [vmem:[#allocation5 + $0x620] sm:$0xff]
    %v332 = vld [vmem:[#allocation5 + $0x628] sm:$0xff]
    %v333 = vld [vmem:[#allocation5 + $0x630] sm:$0xff]
    %v334 = vld [vmem:[#allocation5 + $0x638] sm:$0xff]
    %v335 = vld [vmem:[#allocation5 + $0x640] sm:$0xff]
    %v336 = vld [vmem:[#allocation5 + $0x648] sm:$0xff]
    %v337 = vld [vmem:[#allocation5 + $0x650] sm:$0xff]
    %v338 = vld [vmem:[#allocation5 + $0x658] sm:$0xff]
    %v339 = vld [vmem:[#allocation5 + $0x660] sm:$0xff]
    %v340 = vld [vmem:[#allocation5 + $0x668] sm:$0xff]
    %v341 = vld [vmem:[#allocation5 + $0x670] sm:$0xff]
    %v342 = vld [vmem:[#allocation5 + $0x678] sm:$0xff]
    %v343 = vld [vmem:[#allocation5 + $0x680] sm:$0xff]
    %v344 = vld [vmem:[#allocation5 + $0x688] sm:$0xff]
    %v345 = vld [vmem:[#allocation5 + $0x690] sm:$0xff]
    %v346 = vld [vmem:[#allocation5 + $0x698] sm:$0xff]
    %v347 = vld [vmem:[#allocation5 + $0x6a0] sm:$0xff]
    %v348 = vld [vmem:[#allocation5 + $0x6a8] sm:$0xff]
    %v349 = vld [vmem:[#allocation5 + $0x6b0] sm:$0xff]
    %v350 = vld [vmem:[#allocation5 + $0x6b8] sm:$0xff]
    %v351 = vld [vmem:[#allocation5 + $0x6c0] sm:$0xff]
    %v352 = vld [vmem:[#allocation5 + $0x6c8] sm:$0xff]
    %v353 = vld [vmem:[#allocation5 + $0x6d0] sm:$0xff]
    %v354 = vld [vmem:[#allocation5 + $0x6d8] sm:$0xff]
    %v355 = vld [vmem:[#allocation5 + $0x6e0] sm:$0xff]
    %v356 = vld [vmem:[#allocation5 + $0x6e8] sm:$0xff]
    %v357 = vld [vmem:[#allocation5 + $0x6f0] sm:$0xff]
    %v358 = vld [vmem:[#allocation5 + $0x6f8] sm:$0xff]
    %v359 = vld [vmem:[#allocation5 + $0x700] sm:$0xff]
    %v360 = vld [vmem:[#allocation5 + $0x708] sm:$0xff]
    %v361 = vld [vmem:[#allocation5 + $0x710] sm:$0xff]
    %v362 = vld [vmem:[#allocation5 + $0x718] sm:$0xff]
    %v363 = vld [vmem:[#allocation5 + $0x720] sm:$0xff]
    %v364 = vld [vmem:[#allocation5 + $0x728] sm:$0xff]
    %v365 = vld [vmem:[#allocation5 + $0x730] sm:$0xff]
    %v366 = vld [vmem:[#allocation5 + $0x738] sm:$0xff]
    %v367 = vld [vmem:[#allocation5 + $0x740] sm:$0xff]
    %v368 = vld [vmem:[#allocation5 + $0x748] sm:$0xff]
    %v369 = vld [vmem:[#allocation5 + $0x750] sm:$0xff]
    %v370 = vld [vmem:[#allocation5 + $0x758] sm:$0xff]
    %v371 = vld [vmem:[#allocation5 + $0x760] sm:$0xff]
    %v372 = vld [vmem:[#allocation5 + $0x768] sm:$0xff]
    %v373 = vld [vmem:[#allocation5 + $0x770] sm:$0xff]
    %v374 = vld [vmem:[#allocation5 + $0x778] sm:$0xff]
    %v375 = vld [vmem:[#allocation5 + $0x780] sm:$0xff]
    %v376 = vld [vmem:[#allocation5 + $0x788] sm:$0xff]
    %v377 = vld [vmem:[#allocation5 + $0x790] sm:$0xff]
    %v378 = vld [vmem:[#allocation5 + $0x798] sm:$0xff]
    %v379 = vld [vmem:[#allocation5 + $0x7a0] sm:$0xff]
    %v380 = vld [vmem:[#allocation5 + $0x7a8] sm:$0xff]
    %v381 = vld [vmem:[#allocation5 + $0x7b0] sm:$0xff]
    %v382 = vld [vmem:[#allocation5 + $0x7b8] sm:$0xff]
    %v383 = vld [vmem:[#allocation5 + $0x7c0] sm:$0xff]
    %v384 = vld [vmem:[#allocation5 + $0x7c8] sm:$0xff]
    %v385 = vld [vmem:[#allocation5 + $0x7d0] sm:$0xff]
    %v386 = vld [vmem:[#allocation5 + $0x7d8] sm:$0xff]
    %v387 = vld [vmem:[#allocation5 + $0x7e0] sm:$0xff]
    %v388 = vld [vmem:[#allocation5 + $0x7e8] sm:$0xff]
    %v389 = vld [vmem:[#allocation5 + $0x7f0] sm:$0xff]
    %v390 = vld [vmem:[#allocation5 + $0x7f8] sm:$0xff]
    %v391 = vld [vmem:[#allocation7] sm:$0xf]
    %v393 = vlaneseq
    %v394 = vshrl.u32 %v393, 7
    %v395 = vsub.s32 0, %v394
    %v396 = vrot.slane %v391, %v395
    %v397 = vlaneseq
    %v398 = vshrl.u32 %v397, 7
    %v399 = vsub.s32 1, %v398
    %v400 = vrot.slane %v391, %v399
    %v401 = vlaneseq
    %v402 = vshrl.u32 %v401, 7
    %v403 = vsub.s32 2, %v402
    %v404 = vrot.slane %v391, %v403
    %v405 = vlaneseq
    %v406 = vshrl.u32 %v405, 7
    %v407 = vsub.s32 3, %v406
    %v408 = vrot.slane %v391, %v407
    %v417 = vunpack.c.l.b16 %v131
    %v418 = vunpack.c.h.b16 %v131
    %v419 = vunpack.c.l.b16 %v132
    %v420 = vunpack.c.h.b16 %v132
    %v421 = vunpack.c.l.b16 %v133
    %v422 = vunpack.c.h.b16 %v133
    %v423 = vunpack.c.l.b16 %v134
    %v424 = vunpack.c.h.b16 %v134
    %v425 = vpack.c.b16 %v417, %v417
    %v426 = vpack.c.b16 %v418, %v418
    %v427 = vpack.c.b16 %v419, %v419
    %v428 = vpack.c.b16 %v420, %v420
    %v429 = vpack.c.b16 %v421, %v421
    %v430 = vpack.c.b16 %v422, %v422
    %v431 = vpack.c.b16 %v423, %v423
    %v432 = vpack.c.b16 %v424, %v424
    %v697 = vunpack.c.l.b16 %v135
    %v698 = vunpack.c.h.b16 %v135
    %v699 = vunpack.c.l.b16 %v136
    %v700 = vunpack.c.h.b16 %v136
    %v701 = vunpack.c.l.b16 %v137
    %v702 = vunpack.c.h.b16 %v137
    %v703 = vunpack.c.l.b16 %v138
    %v704 = vunpack.c.h.b16 %v138
    %v705 = vunpack.c.l.b16 %v139
    %v706 = vunpack.c.h.b16 %v139
    %v707 = vunpack.c.l.b16 %v140
    %v708 = vunpack.c.h.b16 %v140
    %v709 = vunpack.c.l.b16 %v141
    %v710 = vunpack.c.h.b16 %v141
    %v711 = vunpack.c.l.b16 %v142
    %v712 = vunpack.c.h.b16 %v142
    %v713 = vunpack.c.l.b16 %v143
    %v714 = vunpack.c.h.b16 %v143
    %v715 = vunpack.c.l.b16 %v144
    %v716 = vunpack.c.h.b16 %v144
    %v717 = vunpack.c.l.b16 %v145
    %v718 = vunpack.c.h.b16 %v145
    %v719 = vunpack.c.l.b16 %v146
    %v720 = vunpack.c.h.b16 %v146
    %v721 = vunpack.c.l.b16 %v147
    %v722 = vunpack.c.h.b16 %v147
    %v723 = vunpack.c.l.b16 %v148
    %v724 = vunpack.c.h.b16 %v148
    %v725 = vunpack.c.l.b16 %v149
    %v726 = vunpack.c.h.b16 %v149
    %v727 = vunpack.c.l.b16 %v150
    %v728 = vunpack.c.h.b16 %v150
    %v729 = vunpack.c.l.b16 %v151
    %v730 = vunpack.c.h.b16 %v151
    %v731 = vunpack.c.l.b16 %v152
    %v732 = vunpack.c.h.b16 %v152
    %v733 = vunpack.c.l.b16 %v153
    %v734 = vunpack.c.h.b16 %v153
    %v735 = vunpack.c.l.b16 %v154
    %v736 = vunpack.c.h.b16 %v154
    %v737 = vunpack.c.l.b16 %v155
    %v738 = vunpack.c.h.b16 %v155
    %v739 = vunpack.c.l.b16 %v156
    %v740 = vunpack.c.h.b16 %v156
    %v741 = vunpack.c.l.b16 %v157
    %v742 = vunpack.c.h.b16 %v157
    %v743 = vunpack.c.l.b16 %v158
    %v744 = vunpack.c.h.b16 %v158
    %v745 = vunpack.c.l.b16 %v159
    %v746 = vunpack.c.h.b16 %v159
    %v747 = vunpack.c.l.b16 %v160
    %v748 = vunpack.c.h.b16 %v160
    %v749 = vunpack.c.l.b16 %v161
    %v750 = vunpack.c.h.b16 %v161
    %v751 = vunpack.c.l.b16 %v162
    %v752 = vunpack.c.h.b16 %v162
    %v753 = vunpack.c.l.b16 %v163
    %v754 = vunpack.c.h.b16 %v163
    %v755 = vunpack.c.l.b16 %v164
    %v756 = vunpack.c.h.b16 %v164
    %v757 = vunpack.c.l.b16 %v165
    %v758 = vunpack.c.h.b16 %v165
    %v759 = vunpack.c.l.b16 %v166
    %v760 = vunpack.c.h.b16 %v166
    %v761 = vunpack.c.l.b16 %v167
    %v762 = vunpack.c.h.b16 %v167
    %v763 = vunpack.c.l.b16 %v168
    %v764 = vunpack.c.h.b16 %v168
    %v765 = vunpack.c.l.b16 %v169
    %v766 = vunpack.c.h.b16 %v169
    %v767 = vunpack.c.l.b16 %v170
    %v768 = vunpack.c.h.b16 %v170
    %v769 = vunpack.c.l.b16 %v171
    %v770 = vunpack.c.h.b16 %v171
    %v771 = vunpack.c.l.b16 %v172
    %v772 = vunpack.c.h.b16 %v172
    %v773 = vunpack.c.l.b16 %v173
    %v774 = vunpack.c.h.b16 %v173
    %v775 = vunpack.c.l.b16 %v174
    %v776 = vunpack.c.h.b16 %v174
    %v777 = vunpack.c.l.b16 %v175
    %v778 = vunpack.c.h.b16 %v175
    %v779 = vunpack.c.l.b16 %v176
    %v780 = vunpack.c.h.b16 %v176
    %v781 = vunpack.c.l.b16 %v177
    %v782 = vunpack.c.h.b16 %v177
    %v783 = vunpack.c.l.b16 %v178
    %v784 = vunpack.c.h.b16 %v178
    %v785 = vunpack.c.l.b16 %v179
    %v786 = vunpack.c.h.b16 %v179
    %v787 = vunpack.c.l.b16 %v180
    %v788 = vunpack.c.h.b16 %v180
    %v789 = vunpack.c.l.b16 %v181
    %v790 = vunpack.c.h.b16 %v181
    %v791 = vunpack.c.l.b16 %v182
    %v792 = vunpack.c.h.b16 %v182
    %v793 = vunpack.c.l.b16 %v183
    %v794 = vunpack.c.h.b16 %v183
    %v795 = vunpack.c.l.b16 %v184
    %v796 = vunpack.c.h.b16 %v184
    %v797 = vunpack.c.l.b16 %v185
    %v798 = vunpack.c.h.b16 %v185
    %v799 = vunpack.c.l.b16 %v186
    %v800 = vunpack.c.h.b16 %v186
    %v801 = vunpack.c.l.b16 %v187
    %v802 = vunpack.c.h.b16 %v187
    %v803 = vunpack.c.l.b16 %v188
    %v804 = vunpack.c.h.b16 %v188
    %v805 = vunpack.c.l.b16 %v189
    %v806 = vunpack.c.h.b16 %v189
    %v807 = vunpack.c.l.b16 %v190
    %v808 = vunpack.c.h.b16 %v190
    %v809 = vunpack.c.l.b16 %v191
    %v810 = vunpack.c.h.b16 %v191
    %v811 = vunpack.c.l.b16 %v192
    %v812 = vunpack.c.h.b16 %v192
    %v813 = vunpack.c.l.b16 %v193
    %v814 = vunpack.c.h.b16 %v193
    %v815 = vunpack.c.l.b16 %v194
    %v816 = vunpack.c.h.b16 %v194
    %v817 = vunpack.c.l.b16 %v195
    %v818 = vunpack.c.h.b16 %v195
    %v819 = vunpack.c.l.b16 %v196
    %v820 = vunpack.c.h.b16 %v196
    %v821 = vunpack.c.l.b16 %v197
    %v822 = vunpack.c.h.b16 %v197
    %v823 = vunpack.c.l.b16 %v198
    %v824 = vunpack.c.h.b16 %v198
    %v825 = vunpack.c.l.b16 %v199
    %v826 = vunpack.c.h.b16 %v199
    %v827 = vunpack.c.l.b16 %v200
    %v828 = vunpack.c.h.b16 %v200
    %v829 = vunpack.c.l.b16 %v201
    %v830 = vunpack.c.h.b16 %v201
    %v831 = vunpack.c.l.b16 %v202
    %v832 = vunpack.c.h.b16 %v202
    %v833 = vunpack.c.l.b16 %v203
    %v834 = vunpack.c.h.b16 %v203
    %v835 = vunpack.c.l.b16 %v204
    %v836 = vunpack.c.h.b16 %v204
    %v837 = vunpack.c.l.b16 %v205
    %v838 = vunpack.c.h.b16 %v205
    %v839 = vunpack.c.l.b16 %v206
    %v840 = vunpack.c.h.b16 %v206
    %v841 = vunpack.c.l.b16 %v207
    %v842 = vunpack.c.h.b16 %v207
    %v843 = vunpack.c.l.b16 %v208
    %v844 = vunpack.c.h.b16 %v208
    %v845 = vunpack.c.l.b16 %v209
    %v846 = vunpack.c.h.b16 %v209
    %v847 = vunpack.c.l.b16 %v210
    %v848 = vunpack.c.h.b16 %v210
    %v849 = vunpack.c.l.b16 %v211
    %v850 = vunpack.c.h.b16 %v211
    %v851 = vunpack.c.l.b16 %v212
    %v852 = vunpack.c.h.b16 %v212
    %v853 = vunpack.c.l.b16 %v213
    %v854 = vunpack.c.h.b16 %v213
    %v855 = vunpack.c.l.b16 %v214
    %v856 = vunpack.c.h.b16 %v214
    %v857 = vunpack.c.l.b16 %v215
    %v858 = vunpack.c.h.b16 %v215
    %v859 = vunpack.c.l.b16 %v216
    %v860 = vunpack.c.h.b16 %v216
    %v861 = vunpack.c.l.b16 %v217
    %v862 = vunpack.c.h.b16 %v217
    %v863 = vunpack.c.l.b16 %v218
    %v864 = vunpack.c.h.b16 %v218
    %v865 = vunpack.c.l.b16 %v219
    %v866 = vunpack.c.h.b16 %v219
    %v867 = vunpack.c.l.b16 %v220
    %v868 = vunpack.c.h.b16 %v220
    %v869 = vunpack.c.l.b16 %v221
    %v870 = vunpack.c.h.b16 %v221
    %v871 = vunpack.c.l.b16 %v222
    %v872 = vunpack.c.h.b16 %v222
    %v873 = vunpack.c.l.b16 %v223
    %v874 = vunpack.c.h.b16 %v223
    %v875 = vunpack.c.l.b16 %v224
    %v876 = vunpack.c.h.b16 %v224
    %v877 = vunpack.c.l.b16 %v225
    %v878 = vunpack.c.h.b16 %v225
    %v879 = vunpack.c.l.b16 %v226
    %v880 = vunpack.c.h.b16 %v226
    %v881 = vunpack.c.l.b16 %v227
    %v882 = vunpack.c.h.b16 %v227
    %v883 = vunpack.c.l.b16 %v228
    %v884 = vunpack.c.h.b16 %v228
    %v885 = vunpack.c.l.b16 %v229
    %v886 = vunpack.c.h.b16 %v229
    %v887 = vunpack.c.l.b16 %v230
    %v888 = vunpack.c.h.b16 %v230
    %v889 = vunpack.c.l.b16 %v231
    %v890 = vunpack.c.h.b16 %v231
    %v891 = vunpack.c.l.b16 %v232
    %v892 = vunpack.c.h.b16 %v232
    %v893 = vunpack.c.l.b16 %v233
    %v894 = vunpack.c.h.b16 %v233
    %v895 = vunpack.c.l.b16 %v234
    %v896 = vunpack.c.h.b16 %v234
    %v897 = vunpack.c.l.b16 %v235
    %v898 = vunpack.c.h.b16 %v235
    %v899 = vunpack.c.l.b16 %v236
    %v900 = vunpack.c.h.b16 %v236
    %v901 = vunpack.c.l.b16 %v237
    %v902 = vunpack.c.h.b16 %v237
    %v903 = vunpack.c.l.b16 %v238
    %v904 = vunpack.c.h.b16 %v238
    %v905 = vunpack.c.l.b16 %v239
    %v906 = vunpack.c.h.b16 %v239
    %v907 = vunpack.c.l.b16 %v240
    %v908 = vunpack.c.h.b16 %v240
    %v909 = vunpack.c.l.b16 %v241
    %v910 = vunpack.c.h.b16 %v241
    %v911 = vunpack.c.l.b16 %v242
    %v912 = vunpack.c.h.b16 %v242
    %v913 = vunpack.c.l.b16 %v243
    %v914 = vunpack.c.h.b16 %v243
    %v915 = vunpack.c.l.b16 %v244
    %v916 = vunpack.c.h.b16 %v244
    %v917 = vunpack.c.l.b16 %v245
    %v918 = vunpack.c.h.b16 %v245
    %v919 = vunpack.c.l.b16 %v246
    %v920 = vunpack.c.h.b16 %v246
    %v921 = vunpack.c.l.b16 %v247
    %v922 = vunpack.c.h.b16 %v247
    %v923 = vunpack.c.l.b16 %v248
    %v924 = vunpack.c.h.b16 %v248
    %v925 = vunpack.c.l.b16 %v249
    %v926 = vunpack.c.h.b16 %v249
    %v927 = vunpack.c.l.b16 %v250
    %v928 = vunpack.c.h.b16 %v250
    %v929 = vunpack.c.l.b16 %v251
    %v930 = vunpack.c.h.b16 %v251
    %v931 = vunpack.c.l.b16 %v252
    %v932 = vunpack.c.h.b16 %v252
    %v933 = vunpack.c.l.b16 %v253
    %v934 = vunpack.c.h.b16 %v253
    %v935 = vunpack.c.l.b16 %v254
    %v936 = vunpack.c.h.b16 %v254
    %v937 = vunpack.c.l.b16 %v255
    %v938 = vunpack.c.h.b16 %v255
    %v939 = vunpack.c.l.b16 %v256
    %v940 = vunpack.c.h.b16 %v256
    %v941 = vunpack.c.l.b16 %v257
    %v942 = vunpack.c.h.b16 %v257
    %v943 = vunpack.c.l.b16 %v258
    %v944 = vunpack.c.h.b16 %v258
    %v945 = vunpack.c.l.b16 %v259
    %v946 = vunpack.c.h.b16 %v259
    %v947 = vunpack.c.l.b16 %v260
    %v948 = vunpack.c.h.b16 %v260
    %v949 = vunpack.c.l.b16 %v261
    %v950 = vunpack.c.h.b16 %v261
    %v951 = vunpack.c.l.b16 %v262
    %v952 = vunpack.c.h.b16 %v262
    %v953 = vunpack.c.l.b16 %v263
    %v954 = vunpack.c.h.b16 %v263
    %v955 = vunpack.c.l.b16 %v264
    %v956 = vunpack.c.h.b16 %v264
    %v957 = vunpack.c.l.b16 %v265
    %v958 = vunpack.c.h.b16 %v265
    %v959 = vunpack.c.l.b16 %v266
    %v960 = vunpack.c.h.b16 %v266
    %v961 = vunpack.c.l.b16 %v267
    %v962 = vunpack.c.h.b16 %v267
    %v963 = vunpack.c.l.b16 %v268
    %v964 = vunpack.c.h.b16 %v268
    %v965 = vunpack.c.l.b16 %v269
    %v966 = vunpack.c.h.b16 %v269
    %v967 = vunpack.c.l.b16 %v270
    %v968 = vunpack.c.h.b16 %v270
    %v969 = vunpack.c.l.b16 %v271
    %v970 = vunpack.c.h.b16 %v271
    %v971 = vunpack.c.l.b16 %v272
    %v972 = vunpack.c.h.b16 %v272
    %v973 = vunpack.c.l.b16 %v273
    %v974 = vunpack.c.h.b16 %v273
    %v975 = vunpack.c.l.b16 %v274
    %v976 = vunpack.c.h.b16 %v274
    %v977 = vunpack.c.l.b16 %v275
    %v978 = vunpack.c.h.b16 %v275
    %v979 = vunpack.c.l.b16 %v276
    %v980 = vunpack.c.h.b16 %v276
    %v981 = vunpack.c.l.b16 %v277
    %v982 = vunpack.c.h.b16 %v277
    %v983 = vunpack.c.l.b16 %v278
    %v984 = vunpack.c.h.b16 %v278
    %v985 = vunpack.c.l.b16 %v279
    %v986 = vunpack.c.h.b16 %v279
    %v987 = vunpack.c.l.b16 %v280
    %v988 = vunpack.c.h.b16 %v280
    %v989 = vunpack.c.l.b16 %v281
    %v990 = vunpack.c.h.b16 %v281
    %v991 = vunpack.c.l.b16 %v282
    %v992 = vunpack.c.h.b16 %v282
    %v993 = vunpack.c.l.b16 %v283
    %v994 = vunpack.c.h.b16 %v283
    %v995 = vunpack.c.l.b16 %v284
    %v996 = vunpack.c.h.b16 %v284
    %v997 = vunpack.c.l.b16 %v285
    %v998 = vunpack.c.h.b16 %v285
    %v999 = vunpack.c.l.b16 %v286
    %v1000 = vunpack.c.h.b16 %v286
    %v1001 = vunpack.c.l.b16 %v287
    %v1002 = vunpack.c.h.b16 %v287
    %v1003 = vunpack.c.l.b16 %v288
    %v1004 = vunpack.c.h.b16 %v288
    %v1005 = vunpack.c.l.b16 %v289
    %v1006 = vunpack.c.h.b16 %v289
    %v1007 = vunpack.c.l.b16 %v290
    %v1008 = vunpack.c.h.b16 %v290
    %v1009 = vunpack.c.l.b16 %v291
    %v1010 = vunpack.c.h.b16 %v291
    %v1011 = vunpack.c.l.b16 %v292
    %v1012 = vunpack.c.h.b16 %v292
    %v1013 = vunpack.c.l.b16 %v293
    %v1014 = vunpack.c.h.b16 %v293
    %v1015 = vunpack.c.l.b16 %v294
    %v1016 = vunpack.c.h.b16 %v294
    %v1017 = vunpack.c.l.b16 %v295
    %v1018 = vunpack.c.h.b16 %v295
    %v1019 = vunpack.c.l.b16 %v296
    %v1020 = vunpack.c.h.b16 %v296
    %v1021 = vunpack.c.l.b16 %v297
    %v1022 = vunpack.c.h.b16 %v297
    %v1023 = vunpack.c.l.b16 %v298
    %v1024 = vunpack.c.h.b16 %v298
    %v1025 = vunpack.c.l.b16 %v299
    %v1026 = vunpack.c.h.b16 %v299
    %v1027 = vunpack.c.l.b16 %v300
    %v1028 = vunpack.c.h.b16 %v300
    %v1029 = vunpack.c.l.b16 %v301
    %v1030 = vunpack.c.h.b16 %v301
    %v1031 = vunpack.c.l.b16 %v302
    %v1032 = vunpack.c.h.b16 %v302
    %v1033 = vunpack.c.l.b16 %v303
    %v1034 = vunpack.c.h.b16 %v303
    %v1035 = vunpack.c.l.b16 %v304
    %v1036 = vunpack.c.h.b16 %v304
    %v1037 = vunpack.c.l.b16 %v305
    %v1038 = vunpack.c.h.b16 %v305
    %v1039 = vunpack.c.l.b16 %v306
    %v1040 = vunpack.c.h.b16 %v306
    %v1041 = vunpack.c.l.b16 %v307
    %v1042 = vunpack.c.h.b16 %v307
    %v1043 = vunpack.c.l.b16 %v308
    %v1044 = vunpack.c.h.b16 %v308
    %v1045 = vunpack.c.l.b16 %v309
    %v1046 = vunpack.c.h.b16 %v309
    %v1047 = vunpack.c.l.b16 %v310
    %v1048 = vunpack.c.h.b16 %v310
    %v1049 = vunpack.c.l.b16 %v311
    %v1050 = vunpack.c.h.b16 %v311
    %v1051 = vunpack.c.l.b16 %v312
    %v1052 = vunpack.c.h.b16 %v312
    %v1053 = vunpack.c.l.b16 %v313
    %v1054 = vunpack.c.h.b16 %v313
    %v1055 = vunpack.c.l.b16 %v314
    %v1056 = vunpack.c.h.b16 %v314
    %v1057 = vunpack.c.l.b16 %v315
    %v1058 = vunpack.c.h.b16 %v315
    %v1059 = vunpack.c.l.b16 %v316
    %v1060 = vunpack.c.h.b16 %v316
    %v1061 = vunpack.c.l.b16 %v317
    %v1062 = vunpack.c.h.b16 %v317
    %v1063 = vunpack.c.l.b16 %v318
    %v1064 = vunpack.c.h.b16 %v318
    %v1065 = vunpack.c.l.b16 %v319
    %v1066 = vunpack.c.h.b16 %v319
    %v1067 = vunpack.c.l.b16 %v320
    %v1068 = vunpack.c.h.b16 %v320
    %v1069 = vunpack.c.l.b16 %v321
    %v1070 = vunpack.c.h.b16 %v321
    %v1071 = vunpack.c.l.b16 %v322
    %v1072 = vunpack.c.h.b16 %v322
    %v1073 = vunpack.c.l.b16 %v323
    %v1074 = vunpack.c.h.b16 %v323
    %v1075 = vunpack.c.l.b16 %v324
    %v1076 = vunpack.c.h.b16 %v324
    %v1077 = vunpack.c.l.b16 %v325
    %v1078 = vunpack.c.h.b16 %v325
    %v1079 = vunpack.c.l.b16 %v326
    %v1080 = vunpack.c.h.b16 %v326
    %v1081 = vunpack.c.l.b16 %v327
    %v1082 = vunpack.c.h.b16 %v327
    %v1083 = vunpack.c.l.b16 %v328
    %v1084 = vunpack.c.h.b16 %v328
    %v1085 = vunpack.c.l.b16 %v329
    %v1086 = vunpack.c.h.b16 %v329
    %v1087 = vunpack.c.l.b16 %v330
    %v1088 = vunpack.c.h.b16 %v330
    %v1089 = vunpack.c.l.b16 %v331
    %v1090 = vunpack.c.h.b16 %v331
    %v1091 = vunpack.c.l.b16 %v332
    %v1092 = vunpack.c.h.b16 %v332
    %v1093 = vunpack.c.l.b16 %v333
    %v1094 = vunpack.c.h.b16 %v333
    %v1095 = vunpack.c.l.b16 %v334
    %v1096 = vunpack.c.h.b16 %v334
    %v1097 = vunpack.c.l.b16 %v335
    %v1098 = vunpack.c.h.b16 %v335
    %v1099 = vunpack.c.l.b16 %v336
    %v1100 = vunpack.c.h.b16 %v336
    %v1101 = vunpack.c.l.b16 %v337
    %v1102 = vunpack.c.h.b16 %v337
    %v1103 = vunpack.c.l.b16 %v338
    %v1104 = vunpack.c.h.b16 %v338
    %v1105 = vunpack.c.l.b16 %v339
    %v1106 = vunpack.c.h.b16 %v339
    %v1107 = vunpack.c.l.b16 %v340
    %v1108 = vunpack.c.h.b16 %v340
    %v1109 = vunpack.c.l.b16 %v341
    %v1110 = vunpack.c.h.b16 %v341
    %v1111 = vunpack.c.l.b16 %v342
    %v1112 = vunpack.c.h.b16 %v342
    %v1113 = vunpack.c.l.b16 %v343
    %v1114 = vunpack.c.h.b16 %v343
    %v1115 = vunpack.c.l.b16 %v344
    %v1116 = vunpack.c.h.b16 %v344
    %v1117 = vunpack.c.l.b16 %v345
    %v1118 = vunpack.c.h.b16 %v345
    %v1119 = vunpack.c.l.b16 %v346
    %v1120 = vunpack.c.h.b16 %v346
    %v1121 = vunpack.c.l.b16 %v347
    %v1122 = vunpack.c.h.b16 %v347
    %v1123 = vunpack.c.l.b16 %v348
    %v1124 = vunpack.c.h.b16 %v348
    %v1125 = vunpack.c.l.b16 %v349
    %v1126 = vunpack.c.h.b16 %v349
    %v1127 = vunpack.c.l.b16 %v350
    %v1128 = vunpack.c.h.b16 %v350
    %v1129 = vunpack.c.l.b16 %v351
    %v1130 = vunpack.c.h.b16 %v351
    %v1131 = vunpack.c.l.b16 %v352
    %v1132 = vunpack.c.h.b16 %v352
    %v1133 = vunpack.c.l.b16 %v353
    %v1134 = vunpack.c.h.b16 %v353
    %v1135 = vunpack.c.l.b16 %v354
    %v1136 = vunpack.c.h.b16 %v354
    %v1137 = vunpack.c.l.b16 %v355
    %v1138 = vunpack.c.h.b16 %v355
    %v1139 = vunpack.c.l.b16 %v356
    %v1140 = vunpack.c.h.b16 %v356
    %v1141 = vunpack.c.l.b16 %v357
    %v1142 = vunpack.c.h.b16 %v357
    %v1143 = vunpack.c.l.b16 %v358
    %v1144 = vunpack.c.h.b16 %v358
    %v1145 = vunpack.c.l.b16 %v359
    %v1146 = vunpack.c.h.b16 %v359
    %v1147 = vunpack.c.l.b16 %v360
    %v1148 = vunpack.c.h.b16 %v360
    %v1149 = vunpack.c.l.b16 %v361
    %v1150 = vunpack.c.h.b16 %v361
    %v1151 = vunpack.c.l.b16 %v362
    %v1152 = vunpack.c.h.b16 %v362
    %v1153 = vunpack.c.l.b16 %v363
    %v1154 = vunpack.c.h.b16 %v363
    %v1155 = vunpack.c.l.b16 %v364
    %v1156 = vunpack.c.h.b16 %v364
    %v1157 = vunpack.c.l.b16 %v365
    %v1158 = vunpack.c.h.b16 %v365
    %v1159 = vunpack.c.l.b16 %v366
    %v1160 = vunpack.c.h.b16 %v366
    %v1161 = vunpack.c.l.b16 %v367
    %v1162 = vunpack.c.h.b16 %v367
    %v1163 = vunpack.c.l.b16 %v368
    %v1164 = vunpack.c.h.b16 %v368
    %v1165 = vunpack.c.l.b16 %v369
    %v1166 = vunpack.c.h.b16 %v369
    %v1167 = vunpack.c.l.b16 %v370
    %v1168 = vunpack.c.h.b16 %v370
    %v1169 = vunpack.c.l.b16 %v371
    %v1170 = vunpack.c.h.b16 %v371
    %v1171 = vunpack.c.l.b16 %v372
    %v1172 = vunpack.c.h.b16 %v372
    %v1173 = vunpack.c.l.b16 %v373
    %v1174 = vunpack.c.h.b16 %v373
    %v1175 = vunpack.c.l.b16 %v374
    %v1176 = vunpack.c.h.b16 %v374
    %v1177 = vunpack.c.l.b16 %v375
    %v1178 = vunpack.c.h.b16 %v375
    %v1179 = vunpack.c.l.b16 %v376
    %v1180 = vunpack.c.h.b16 %v376
    %v1181 = vunpack.c.l.b16 %v377
    %v1182 = vunpack.c.h.b16 %v377
    %v1183 = vunpack.c.l.b16 %v378
    %v1184 = vunpack.c.h.b16 %v378
    %v1185 = vunpack.c.l.b16 %v379
    %v1186 = vunpack.c.h.b16 %v379
    %v1187 = vunpack.c.l.b16 %v380
    %v1188 = vunpack.c.h.b16 %v380
    %v1189 = vunpack.c.l.b16 %v381
    %v1190 = vunpack.c.h.b16 %v381
    %v1191 = vunpack.c.l.b16 %v382
    %v1192 = vunpack.c.h.b16 %v382
    %v1193 = vunpack.c.l.b16 %v383
    %v1194 = vunpack.c.h.b16 %v383
    %v1195 = vunpack.c.l.b16 %v384
    %v1196 = vunpack.c.h.b16 %v384
    %v1197 = vunpack.c.l.b16 %v385
    %v1198 = vunpack.c.h.b16 %v385
    %v1199 = vunpack.c.l.b16 %v386
    %v1200 = vunpack.c.h.b16 %v386
    %v1201 = vunpack.c.l.b16 %v387
    %v1202 = vunpack.c.h.b16 %v387
    %v1203 = vunpack.c.l.b16 %v388
    %v1204 = vunpack.c.h.b16 %v388
    %v1205 = vunpack.c.l.b16 %v389
    %v1206 = vunpack.c.h.b16 %v389
    %v1207 = vunpack.c.l.b16 %v390
    %v1208 = vunpack.c.h.b16 %v390
    %v1209 = vpack.c.b16 %v701, %v697
    %v1210 = vpack.c.b16 %v702, %v698
    %v1211 = vpack.c.b16 %v703, %v699
    %v1212 = vpack.c.b16 %v704, %v700
    %v1213 = vpack.c.b16 %v709, %v705
    %v1214 = vpack.c.b16 %v710, %v706
    %v1215 = vpack.c.b16 %v711, %v707
    %v1216 = vpack.c.b16 %v712, %v708
    %v1217 = vpack.c.b16 %v717, %v713
    %v1218 = vpack.c.b16 %v718, %v714
    %v1219 = vpack.c.b16 %v719, %v715
    %v1220 = vpack.c.b16 %v720, %v716
    %v1221 = vpack.c.b16 %v725, %v721
    %v1222 = vpack.c.b16 %v726, %v722
    %v1223 = vpack.c.b16 %v727, %v723
    %v1224 = vpack.c.b16 %v728, %v724
    %v1225 = vpack.c.b16 %v733, %v729
    %v1226 = vpack.c.b16 %v734, %v730
    %v1227 = vpack.c.b16 %v735, %v731
    %v1228 = vpack.c.b16 %v736, %v732
    %v1229 = vpack.c.b16 %v741, %v737
    %v1230 = vpack.c.b16 %v742, %v738
    %v1231 = vpack.c.b16 %v743, %v739
    %v1232 = vpack.c.b16 %v744, %v740
    %v1233 = vpack.c.b16 %v749, %v745
    %v1234 = vpack.c.b16 %v750, %v746
    %v1235 = vpack.c.b16 %v751, %v747
    %v1236 = vpack.c.b16 %v752, %v748
    %v1237 = vpack.c.b16 %v757, %v753
    %v1238 = vpack.c.b16 %v758, %v754
    %v1239 = vpack.c.b16 %v759, %v755
    %v1240 = vpack.c.b16 %v760, %v756
    %v1241 = vpack.c.b16 %v765, %v761
    %v1242 = vpack.c.b16 %v766, %v762
    %v1243 = vpack.c.b16 %v767, %v763
    %v1244 = vpack.c.b16 %v768, %v764
    %v1245 = vpack.c.b16 %v773, %v769
    %v1246 = vpack.c.b16 %v774, %v770
    %v1247 = vpack.c.b16 %v775, %v771
    %v1248 = vpack.c.b16 %v776, %v772
    %v1249 = vpack.c.b16 %v781, %v777
    %v1250 = vpack.c.b16 %v782, %v778
    %v1251 = vpack.c.b16 %v783, %v779
    %v1252 = vpack.c.b16 %v784, %v780
    %v1253 = vpack.c.b16 %v789, %v785
    %v1254 = vpack.c.b16 %v790, %v786
    %v1255 = vpack.c.b16 %v791, %v787
    %v1256 = vpack.c.b16 %v792, %v788
    %v1257 = vpack.c.b16 %v797, %v793
    %v1258 = vpack.c.b16 %v798, %v794
    %v1259 = vpack.c.b16 %v799, %v795
    %v1260 = vpack.c.b16 %v800, %v796
    %v1261 = vpack.c.b16 %v805, %v801
    %v1262 = vpack.c.b16 %v806, %v802
    %v1263 = vpack.c.b16 %v807, %v803
    %v1264 = vpack.c.b16 %v808, %v804
    %v1265 = vpack.c.b16 %v813, %v809
    %v1266 = vpack.c.b16 %v814, %v810
    %v1267 = vpack.c.b16 %v815, %v811
    %v1268 = vpack.c.b16 %v816, %v812
    %v1269 = vpack.c.b16 %v821, %v817
    %v1270 = vpack.c.b16 %v822, %v818
    %v1271 = vpack.c.b16 %v823, %v819
    %v1272 = vpack.c.b16 %v824, %v820
    %v1273 = vpack.c.b16 %v829, %v825
    %v1274 = vpack.c.b16 %v830, %v826
    %v1275 = vpack.c.b16 %v831, %v827
    %v1276 = vpack.c.b16 %v832, %v828
    %v1277 = vpack.c.b16 %v837, %v833
    %v1278 = vpack.c.b16 %v838, %v834
    %v1279 = vpack.c.b16 %v839, %v835
    %v1280 = vpack.c.b16 %v840, %v836
    %v1281 = vpack.c.b16 %v845, %v841
    %v1282 = vpack.c.b16 %v846, %v842
    %v1283 = vpack.c.b16 %v847, %v843
    %v1284 = vpack.c.b16 %v848, %v844
    %v1285 = vpack.c.b16 %v853, %v849
    %v1286 = vpack.c.b16 %v854, %v850
    %v1287 = vpack.c.b16 %v855, %v851
    %v1288 = vpack.c.b16 %v856, %v852
    %v1289 = vpack.c.b16 %v861, %v857
    %v1290 = vpack.c.b16 %v862, %v858
    %v1291 = vpack.c.b16 %v863, %v859
    %v1292 = vpack.c.b16 %v864, %v860
    %v1293 = vpack.c.b16 %v869, %v865
    %v1294 = vpack.c.b16 %v870, %v866
    %v1295 = vpack.c.b16 %v871, %v867
    %v1296 = vpack.c.b16 %v872, %v868
    %v1297 = vpack.c.b16 %v877, %v873
    %v1298 = vpack.c.b16 %v878, %v874
    %v1299 = vpack.c.b16 %v879, %v875
    %v1300 = vpack.c.b16 %v880, %v876
    %v1301 = vpack.c.b16 %v885, %v881
    %v1302 = vpack.c.b16 %v886, %v882
    %v1303 = vpack.c.b16 %v887, %v883
    %v1304 = vpack.c.b16 %v888, %v884
    %v1305 = vpack.c.b16 %v893, %v889
    %v1306 = vpack.c.b16 %v894, %v890
    %v1307 = vpack.c.b16 %v895, %v891
    %v1308 = vpack.c.b16 %v896, %v892
    %v1309 = vpack.c.b16 %v901, %v897
    %v1310 = vpack.c.b16 %v902, %v898
    %v1311 = vpack.c.b16 %v903, %v899
    %v1312 = vpack.c.b16 %v904, %v900
    %v1313 = vpack.c.b16 %v909, %v905
    %v1314 = vpack.c.b16 %v910, %v906
    %v1315 = vpack.c.b16 %v911, %v907
    %v1316 = vpack.c.b16 %v912, %v908
    %v1317 = vpack.c.b16 %v917, %v913
    %v1318 = vpack.c.b16 %v918, %v914
    %v1319 = vpack.c.b16 %v919, %v915
    %v1320 = vpack.c.b16 %v920, %v916
    %v1321 = vpack.c.b16 %v925, %v921
    %v1322 = vpack.c.b16 %v926, %v922
    %v1323 = vpack.c.b16 %v927, %v923
    %v1324 = vpack.c.b16 %v928, %v924
    %v1325 = vpack.c.b16 %v933, %v929
    %v1326 = vpack.c.b16 %v934, %v930
    %v1327 = vpack.c.b16 %v935, %v931
    %v1328 = vpack.c.b16 %v936, %v932
    %v1329 = vpack.c.b16 %v941, %v937
    %v1330 = vpack.c.b16 %v942, %v938
    %v1331 = vpack.c.b16 %v943, %v939
    %v1332 = vpack.c.b16 %v944, %v940
    %v1333 = vpack.c.b16 %v949, %v945
    %v1334 = vpack.c.b16 %v950, %v946
    %v1335 = vpack.c.b16 %v951, %v947
    %v1336 = vpack.c.b16 %v952, %v948
    %v1337 = vpack.c.b16 %v957, %v953
    %v1338 = vpack.c.b16 %v958, %v954
    %v1339 = vpack.c.b16 %v959, %v955
    %v1340 = vpack.c.b16 %v960, %v956
    %v1341 = vpack.c.b16 %v965, %v961
    %v1342 = vpack.c.b16 %v966, %v962
    %v1343 = vpack.c.b16 %v967, %v963
    %v1344 = vpack.c.b16 %v968, %v964
    %v1345 = vpack.c.b16 %v973, %v969
    %v1346 = vpack.c.b16 %v974, %v970
    %v1347 = vpack.c.b16 %v975, %v971
    %v1348 = vpack.c.b16 %v976, %v972
    %v1349 = vpack.c.b16 %v981, %v977
    %v1350 = vpack.c.b16 %v982, %v978
    %v1351 = vpack.c.b16 %v983, %v979
    %v1352 = vpack.c.b16 %v984, %v980
    %v1353 = vpack.c.b16 %v989, %v985
    %v1354 = vpack.c.b16 %v990, %v986
    %v1355 = vpack.c.b16 %v991, %v987
    %v1356 = vpack.c.b16 %v992, %v988
    %v1357 = vpack.c.b16 %v997, %v993
    %v1358 = vpack.c.b16 %v998, %v994
    %v1359 = vpack.c.b16 %v999, %v995
    %v1360 = vpack.c.b16 %v1000, %v996
    %v1361 = vpack.c.b16 %v1005, %v1001
    %v1362 = vpack.c.b16 %v1006, %v1002
    %v1363 = vpack.c.b16 %v1007, %v1003
    %v1364 = vpack.c.b16 %v1008, %v1004
    %v1365 = vpack.c.b16 %v1013, %v1009
    %v1366 = vpack.c.b16 %v1014, %v1010
    %v1367 = vpack.c.b16 %v1015, %v1011
    %v1368 = vpack.c.b16 %v1016, %v1012
    %v1369 = vpack.c.b16 %v1021, %v1017
    %v1370 = vpack.c.b16 %v1022, %v1018
    %v1371 = vpack.c.b16 %v1023, %v1019
    %v1372 = vpack.c.b16 %v1024, %v1020
    %v1373 = vpack.c.b16 %v1029, %v1025
    %v1374 = vpack.c.b16 %v1030, %v1026
    %v1375 = vpack.c.b16 %v1031, %v1027
    %v1376 = vpack.c.b16 %v1032, %v1028
    %v1377 = vpack.c.b16 %v1037, %v1033
    %v1378 = vpack.c.b16 %v1038, %v1034
    %v1379 = vpack.c.b16 %v1039, %v1035
    %v1380 = vpack.c.b16 %v1040, %v1036
    %v1381 = vpack.c.b16 %v1045, %v1041
    %v1382 = vpack.c.b16 %v1046, %v1042
    %v1383 = vpack.c.b16 %v1047, %v1043
    %v1384 = vpack.c.b16 %v1048, %v1044
    %v1385 = vpack.c.b16 %v1053, %v1049
    %v1386 = vpack.c.b16 %v1054, %v1050
    %v1387 = vpack.c.b16 %v1055, %v1051
    %v1388 = vpack.c.b16 %v1056, %v1052
    %v1389 = vpack.c.b16 %v1061, %v1057
    %v1390 = vpack.c.b16 %v1062, %v1058
    %v1391 = vpack.c.b16 %v1063, %v1059
    %v1392 = vpack.c.b16 %v1064, %v1060
    %v1393 = vpack.c.b16 %v1069, %v1065
    %v1394 = vpack.c.b16 %v1070, %v1066
    %v1395 = vpack.c.b16 %v1071, %v1067
    %v1396 = vpack.c.b16 %v1072, %v1068
    %v1397 = vpack.c.b16 %v1077, %v1073
    %v1398 = vpack.c.b16 %v1078, %v1074
    %v1399 = vpack.c.b16 %v1079, %v1075
    %v1400 = vpack.c.b16 %v1080, %v1076
    %v1401 = vpack.c.b16 %v1085, %v1081
    %v1402 = vpack.c.b16 %v1086, %v1082
    %v1403 = vpack.c.b16 %v1087, %v1083
    %v1404 = vpack.c.b16 %v1088, %v1084
    %v1405 = vpack.c.b16 %v1093, %v1089
    %v1406 = vpack.c.b16 %v1094, %v1090
    %v1407 = vpack.c.b16 %v1095, %v1091
    %v1408 = vpack.c.b16 %v1096, %v1092
    %v1409 = vpack.c.b16 %v1101, %v1097
    %v1410 = vpack.c.b16 %v1102, %v1098
    %v1411 = vpack.c.b16 %v1103, %v1099
    %v1412 = vpack.c.b16 %v1104, %v1100
    %v1413 = vpack.c.b16 %v1109, %v1105
    %v1414 = vpack.c.b16 %v1110, %v1106
    %v1415 = vpack.c.b16 %v1111, %v1107
    %v1416 = vpack.c.b16 %v1112, %v1108
    %v1417 = vpack.c.b16 %v1117, %v1113
    %v1418 = vpack.c.b16 %v1118, %v1114
    %v1419 = vpack.c.b16 %v1119, %v1115
    %v1420 = vpack.c.b16 %v1120, %v1116
    %v1421 = vpack.c.b16 %v1125, %v1121
    %v1422 = vpack.c.b16 %v1126, %v1122
    %v1423 = vpack.c.b16 %v1127, %v1123
    %v1424 = vpack.c.b16 %v1128, %v1124
    %v1425 = vpack.c.b16 %v1133, %v1129
    %v1426 = vpack.c.b16 %v1134, %v1130
    %v1427 = vpack.c.b16 %v1135, %v1131
    %v1428 = vpack.c.b16 %v1136, %v1132
    %v1429 = vpack.c.b16 %v1141, %v1137
    %v1430 = vpack.c.b16 %v1142, %v1138
    %v1431 = vpack.c.b16 %v1143, %v1139
    %v1432 = vpack.c.b16 %v1144, %v1140
    %v1433 = vpack.c.b16 %v1149, %v1145
    %v1434 = vpack.c.b16 %v1150, %v1146
    %v1435 = vpack.c.b16 %v1151, %v1147
    %v1436 = vpack.c.b16 %v1152, %v1148
    %v1437 = vpack.c.b16 %v1157, %v1153
    %v1438 = vpack.c.b16 %v1158, %v1154
    %v1439 = vpack.c.b16 %v1159, %v1155
    %v1440 = vpack.c.b16 %v1160, %v1156
    %v1441 = vpack.c.b16 %v1165, %v1161
    %v1442 = vpack.c.b16 %v1166, %v1162
    %v1443 = vpack.c.b16 %v1167, %v1163
    %v1444 = vpack.c.b16 %v1168, %v1164
    %v1445 = vpack.c.b16 %v1173, %v1169
    %v1446 = vpack.c.b16 %v1174, %v1170
    %v1447 = vpack.c.b16 %v1175, %v1171
    %v1448 = vpack.c.b16 %v1176, %v1172
    %v1449 = vpack.c.b16 %v1181, %v1177
    %v1450 = vpack.c.b16 %v1182, %v1178
    %v1451 = vpack.c.b16 %v1183, %v1179
    %v1452 = vpack.c.b16 %v1184, %v1180
    %v1453 = vpack.c.b16 %v1189, %v1185
    %v1454 = vpack.c.b16 %v1190, %v1186
    %v1455 = vpack.c.b16 %v1191, %v1187
    %v1456 = vpack.c.b16 %v1192, %v1188
    %v1457 = vpack.c.b16 %v1197, %v1193
    %v1458 = vpack.c.b16 %v1198, %v1194
    %v1459 = vpack.c.b16 %v1199, %v1195
    %v1460 = vpack.c.b16 %v1200, %v1196
    %v1461 = vpack.c.b16 %v1205, %v1201
    %v1462 = vpack.c.b16 %v1206, %v1202
    %v1463 = vpack.c.b16 %v1207, %v1203
    %v1464 = vpack.c.b16 %v1208, %v1204
    %1721 = vmatprep.subr.bf16.mxu0 %v1238
    %1722 = vmatpush1.bf16.msra.mxu0 %v1237
    %1723 = vmatprep.subr.bf16.mxu0 %v1234
    %1724 = vmatpush1.bf16.msra.mxu0 %v1233
    %1725 = vmatprep.subr.bf16.mxu0 %v1230
    %1726 = vmatpush1.bf16.msra.mxu0 %v1229
    %1727 = vmatprep.subr.bf16.mxu0 %v1226
    %1728 = vmatpush1.bf16.msra.mxu0 %v1225
    %1729 = vmatprep.subr.bf16.mxu0 %v1222
    %1730 = vmatpush1.bf16.msra.mxu0 %v1221
    %1731 = vmatprep.subr.bf16.mxu0 %v1218
    %1732 = vmatpush1.bf16.msra.mxu0 %v1217
    %1733 = vmatprep.subr.bf16.mxu0 %v1214
    %1734 = vmatpush1.bf16.msra.mxu0 %v1213
    %1735 = vmatprep.subr.bf16.mxu0 %v1210
    %1736 = vmatpush1.bf16.msra.mxu0 %v1209
    %1737 = vmatprep.subr.bf16.mxu0 %v1270
    %1738 = vmatpush2.bf16.msra.mxu0 %v1269
    %1739 = vmatprep.subr.bf16.mxu0 %v1266
    %1740 = vmatpush2.bf16.msra.mxu0 %v1265
    %1741 = vmatprep.subr.bf16.mxu0 %v1262
    %1742 = vmatpush2.bf16.msra.mxu0 %v1261
    %1743 = vmatprep.subr.bf16.mxu0 %v1258
    %1744 = vmatpush2.bf16.msra.mxu0 %v1257
    %1745 = vmatprep.subr.bf16.mxu0 %v1254
    %1746 = vmatpush2.bf16.msra.mxu0 %v1253
    %1747 = vmatprep.subr.bf16.mxu0 %v1250
    %1748 = vmatpush2.bf16.msra.mxu0 %v1249
    %1749 = vmatprep.subr.bf16.mxu0 %v1246
    %1750 = vmatpush2.bf16.msra.mxu0 %v1245
    %1751 = vmatprep.subr.bf16.mxu0 %v1242
    %1752 = vmatpush2.bf16.msra.mxu0 %v1241
    %1753 = vmatprep.mubr.bf16.mxu0 %v426
    %1754 = vmatmul.mubr.bf16.gmra.mxu0 %v425
    %v1755 = vpop.f32.mrf.mxu0
    %v1756 = vadd.f32 %v396, %v1755
    %v1757 = vpop.f32.mrf.mxu0
    %v1758 = vadd.f32 %v400, %v1757
    %v1759 = vpop.f32.mrf.mxu0
    %v1760 = vpop.f32.mrf.mxu0
    %1761 = vdwg.mxu0
    %1762 = vmatprep.subr.bf16.mxu0 %v1302
    %1763 = vmatpush1.bf16.msra.mxu0 %v1301
    %1764 = vmatprep.subr.bf16.mxu0 %v1298
    %1765 = vmatpush1.bf16.msra.mxu0 %v1297
    %1766 = vmatprep.subr.bf16.mxu0 %v1294
    %1767 = vmatpush1.bf16.msra.mxu0 %v1293
    %1768 = vmatprep.subr.bf16.mxu0 %v1290
    %1769 = vmatpush1.bf16.msra.mxu0 %v1289
    %1770 = vmatprep.subr.bf16.mxu0 %v1286
    %1771 = vmatpush1.bf16.msra.mxu0 %v1285
    %1772 = vmatprep.subr.bf16.mxu0 %v1282
    %1773 = vmatpush1.bf16.msra.mxu0 %v1281
    %1774 = vmatprep.subr.bf16.mxu0 %v1278
    %1775 = vmatpush1.bf16.msra.mxu0 %v1277
    %1776 = vmatprep.subr.bf16.mxu0 %v1274
    %1777 = vmatpush1.bf16.msra.mxu0 %v1273
    %1778 = vmatprep.subr.bf16.mxu0 %v1334
    %1779 = vmatpush2.bf16.msra.mxu0 %v1333
    %1780 = vmatprep.subr.bf16.mxu0 %v1330
    %1781 = vmatpush2.bf16.msra.mxu0 %v1329
    %1782 = vmatprep.subr.bf16.mxu0 %v1326
    %1783 = vmatpush2.bf16.msra.mxu0 %v1325
    %1784 = vmatprep.subr.bf16.mxu0 %v1322
    %1785 = vmatpush2.bf16.msra.mxu0 %v1321
    %1786 = vmatprep.subr.bf16.mxu0 %v1318
    %1787 = vmatpush2.bf16.msra.mxu0 %v1317
    %1788 = vmatprep.subr.bf16.mxu0 %v1314
    %1789 = vmatpush2.bf16.msra.mxu0 %v1313
    %1790 = vmatprep.subr.bf16.mxu0 %v1310
    %1791 = vmatpush2.bf16.msra.mxu0 %v1309
    %1792 = vmatprep.subr.bf16.mxu0 %v1306
    %1793 = vmatpush2.bf16.msra.mxu0 %v1305
    %1794 = vmatprep.mubr.bf16.mxu0 %v428
    %1795 = vmatmul.mubr.bf16.gmra.mxu0 %v427
    %v1796 = vpop.f32.mrf.mxu0
    %v1797 = vadd.f32 %v1756, %v1796
    %v1798 = vpop.f32.mrf.mxu0
    %v1799 = vadd.f32 %v1758, %v1798
    %v1800 = vpop.f32.mrf.mxu0
    %v1801 = vpop.f32.mrf.mxu0
    %1802 = vdwg.mxu0
    %1803 = vmatprep.subr.bf16.mxu0 %v1366
    %1804 = vmatpush1.bf16.msra.mxu0 %v1365
    %1805 = vmatprep.subr.bf16.mxu0 %v1362
    %1806 = vmatpush1.bf16.msra.mxu0 %v1361
    %1807 = vmatprep.subr.bf16.mxu0 %v1358
    %1808 = vmatpush1.bf16.msra.mxu0 %v1357
    %1809 = vmatprep.subr.bf16.mxu0 %v1354
    %1810 = vmatpush1.bf16.msra.mxu0 %v1353
    %1811 = vmatprep.subr.bf16.mxu0 %v1350
    %1812 = vmatpush1.bf16.msra.mxu0 %v1349
    %1813 = vmatprep.subr.bf16.mxu0 %v1346
    %1814 = vmatpush1.bf16.msra.mxu0 %v1345
    %1815 = vmatprep.subr.bf16.mxu0 %v1342
    %1816 = vmatpush1.bf16.msra.mxu0 %v1341
    %1817 = vmatprep.subr.bf16.mxu0 %v1338
    %1818 = vmatpush1.bf16.msra.mxu0 %v1337
    %1819 = vmatprep.subr.bf16.mxu0 %v1398
    %1820 = vmatpush2.bf16.msra.mxu0 %v1397
    %1821 = vmatprep.subr.bf16.mxu0 %v1394
    %1822 = vmatpush2.bf16.msra.mxu0 %v1393
    %1823 = vmatprep.subr.bf16.mxu0 %v1390
    %1824 = vmatpush2.bf16.msra.mxu0 %v1389
    %1825 = vmatprep.subr.bf16.mxu0 %v1386
    %1826 = vmatpush2.bf16.msra.mxu0 %v1385
    %1827 = vmatprep.subr.bf16.mxu0 %v1382
    %1828 = vmatpush2.bf16.msra.mxu0 %v1381
    %1829 = vmatprep.subr.bf16.mxu0 %v1378
    %1830 = vmatpush2.bf16.msra.mxu0 %v1377
    %1831 = vmatprep.subr.bf16.mxu0 %v1374
    %1832 = vmatpush2.bf16.msra.mxu0 %v1373
    %1833 = vmatprep.subr.bf16.mxu0 %v1370
    %1834 = vmatpush2.bf16.msra.mxu0 %v1369
    %1835 = vmatprep.mubr.bf16.mxu0 %v430
    %1836 = vmatmul.mubr.bf16.gmra.mxu0 %v429
    %v1837 = vpop.f32.mrf.mxu0
    %v1838 = vadd.f32 %v1797, %v1837
    %v1839 = vpop.f32.mrf.mxu0
    %v1840 = vadd.f32 %v1799, %v1839
    %v1841 = vpop.f32.mrf.mxu0
    %v1842 = vpop.f32.mrf.mxu0
    %1843 = vdwg.mxu0
    %1844 = vmatprep.subr.bf16.mxu0 %v1430
    %1845 = vmatpush1.bf16.msra.mxu0 %v1429
    %1846 = vmatprep.subr.bf16.mxu0 %v1426
    %1847 = vmatpush1.bf16.msra.mxu0 %v1425
    %1848 = vmatprep.subr.bf16.mxu0 %v1422
    %1849 = vmatpush1.bf16.msra.mxu0 %v1421
    %1850 = vmatprep.subr.bf16.mxu0 %v1418
    %1851 = vmatpush1.bf16.msra.mxu0 %v1417
    %1852 = vmatprep.subr.bf16.mxu0 %v1414
    %1853 = vmatpush1.bf16.msra.mxu0 %v1413
    %1854 = vmatprep.subr.bf16.mxu0 %v1410
    %1855 = vmatpush1.bf16.msra.mxu0 %v1409
    %1856 = vmatprep.subr.bf16.mxu0 %v1406
    %1857 = vmatpush1.bf16.msra.mxu0 %v1405
    %1858 = vmatprep.subr.bf16.mxu0 %v1402
    %1859 = vmatpush1.bf16.msra.mxu0 %v1401
    %1860 = vmatprep.subr.bf16.mxu0 %v1462
    %1861 = vmatpush2.bf16.msra.mxu0 %v1461
    %1862 = vmatprep.subr.bf16.mxu0 %v1458
    %1863 = vmatpush2.bf16.msra.mxu0 %v1457
    %1864 = vmatprep.subr.bf16.mxu0 %v1454
    %1865 = vmatpush2.bf16.msra.mxu0 %v1453
    %1866 = vmatprep.subr.bf16.mxu0 %v1450
    %1867 = vmatpush2.bf16.msra.mxu0 %v1449
    %1868 = vmatprep.subr.bf16.mxu0 %v1446
    %1869 = vmatpush2.bf16.msra.mxu0 %v1445
    %1870 = vmatprep.subr.bf16.mxu0 %v1442
    %1871 = vmatpush2.bf16.msra.mxu0 %v1441
    %1872 = vmatprep.subr.bf16.mxu0 %v1438
    %1873 = vmatpush2.bf16.msra.mxu0 %v1437
    %1874 = vmatprep.subr.bf16.mxu0 %v1434
    %1875 = vmatpush2.bf16.msra.mxu0 %v1433
    %1876 = vmatprep.mubr.bf16.mxu0 %v432
    %1877 = vmatmul.mubr.bf16.gmra.mxu0 %v431
    %v1878 = vpop.f32.mrf.mxu0
    %v1879 = vadd.f32 %v1838, %v1878
    %v1880 = vpop.f32.mrf.mxu0
    %v1881 = vadd.f32 %v1840, %v1880
    %v1882 = vpop.f32.mrf.mxu0
    %v1883 = vpop.f32.mrf.mxu0
    %1884 = vdwg.mxu0
    %1885 = vmatprep.subr.bf16.mxu0 %v1240
    %1886 = vmatpush1.bf16.msra.mxu0 %v1239
    %1887 = vmatprep.subr.bf16.mxu0 %v1236
    %1888 = vmatpush1.bf16.msra.mxu0 %v1235
    %1889 = vmatprep.subr.bf16.mxu0 %v1232
    %1890 = vmatpush1.bf16.msra.mxu0 %v1231
    %1891 = vmatprep.subr.bf16.mxu0 %v1228
    %1892 = vmatpush1.bf16.msra.mxu0 %v1227
    %1893 = vmatprep.subr.bf16.mxu0 %v1224
    %1894 = vmatpush1.bf16.msra.mxu0 %v1223
    %1895 = vmatprep.subr.bf16.mxu0 %v1220
    %1896 = vmatpush1.bf16.msra.mxu0 %v1219
    %1897 = vmatprep.subr.bf16.mxu0 %v1216
    %1898 = vmatpush1.bf16.msra.mxu0 %v1215
    %1899 = vmatprep.subr.bf16.mxu0 %v1212
    %1900 = vmatpush1.bf16.msra.mxu0 %v1211
    %1901 = vmatprep.subr.bf16.mxu0 %v1272
    %1902 = vmatpush2.bf16.msra.mxu0 %v1271
    %1903 = vmatprep.subr.bf16.mxu0 %v1268
    %1904 = vmatpush2.bf16.msra.mxu0 %v1267
    %1905 = vmatprep.subr.bf16.mxu0 %v1264
    %1906 = vmatpush2.bf16.msra.mxu0 %v1263
    %1907 = vmatprep.subr.bf16.mxu0 %v1260
    %1908 = vmatpush2.bf16.msra.mxu0 %v1259
    %1909 = vmatprep.subr.bf16.mxu0 %v1256
    %1910 = vmatpush2.bf16.msra.mxu0 %v1255
    %1911 = vmatprep.subr.bf16.mxu0 %v1252
    %1912 = vmatpush2.bf16.msra.mxu0 %v1251
    %1913 = vmatprep.subr.bf16.mxu0 %v1248
    %1914 = vmatpush2.bf16.msra.mxu0 %v1247
    %1915 = vmatprep.subr.bf16.mxu0 %v1244
    %1916 = vmatpush2.bf16.msra.mxu0 %v1243
    %1917 = vmatprep.mubr.bf16.mxu0 %v426
    %1918 = vmatmul.mubr.bf16.gmra.mxu0 %v425
    %v1919 = vpop.f32.mrf.mxu0
    %v1920 = vadd.f32 %v404, %v1919
    %v1921 = vpop.f32.mrf.mxu0
    %v1922 = vadd.f32 %v408, %v1921
    %v1923 = vpop.f32.mrf.mxu0
    %v1924 = vpop.f32.mrf.mxu0
    %1925 = vdwg.mxu0
    %1926 = vmatprep.subr.bf16.mxu0 %v1304
    %1927 = vmatpush1.bf16.msra.mxu0 %v1303
    %1928 = vmatprep.subr.bf16.mxu0 %v1300
    %1929 = vmatpush1.bf16.msra.mxu0 %v1299
    %1930 = vmatprep.subr.bf16.mxu0 %v1296
    %1931 = vmatpush1.bf16.msra.mxu0 %v1295
    %1932 = vmatprep.subr.bf16.mxu0 %v1292
    %1933 = vmatpush1.bf16.msra.mxu0 %v1291
    %1934 = vmatprep.subr.bf16.mxu0 %v1288
    %1935 = vmatpush1.bf16.msra.mxu0 %v1287
    %1936 = vmatprep.subr.bf16.mxu0 %v1284
    %1937 = vmatpush1.bf16.msra.mxu0 %v1283
    %1938 = vmatprep.subr.bf16.mxu0 %v1280
    %1939 = vmatpush1.bf16.msra.mxu0 %v1279
    %1940 = vmatprep.subr.bf16.mxu0 %v1276
    %1941 = vmatpush1.bf16.msra.mxu0 %v1275
    %1942 = vmatprep.subr.bf16.mxu0 %v1336
    %1943 = vmatpush2.bf16.msra.mxu0 %v1335
    %1944 = vmatprep.subr.bf16.mxu0 %v1332
    %1945 = vmatpush2.bf16.msra.mxu0 %v1331
    %1946 = vmatprep.subr.bf16.mxu0 %v1328
    %1947 = vmatpush2.bf16.msra.mxu0 %v1327
    %1948 = vmatprep.subr.bf16.mxu0 %v1324
    %1949 = vmatpush2.bf16.msra.mxu0 %v1323
    %1950 = vmatprep.subr.bf16.mxu0 %v1320
    %1951 = vmatpush2.bf16.msra.mxu0 %v1319
    %1952 = vmatprep.subr.bf16.mxu0 %v1316
    %1953 = vmatpush2.bf16.msra.mxu0 %v1315
    %1954 = vmatprep.subr.bf16.mxu0 %v1312
    %1955 = vmatpush2.bf16.msra.mxu0 %v1311
    %1956 = vmatprep.subr.bf16.mxu0 %v1308
    %1957 = vmatpush2.bf16.msra.mxu0 %v1307
    %1958 = vmatprep.mubr.bf16.mxu0 %v428
    %1959 = vmatmul.mubr.bf16.gmra.mxu0 %v427
    %v1960 = vpop.f32.mrf.mxu0
    %v1961 = vadd.f32 %v1920, %v1960
    %v1962 = vpop.f32.mrf.mxu0
    %v1963 = vadd.f32 %v1922, %v1962
    %v1964 = vpop.f32.mrf.mxu0
    %v1965 = vpop.f32.mrf.mxu0
    %1966 = vdwg.mxu0
    %1967 = vmatprep.subr.bf16.mxu0 %v1368
    %1968 = vmatpush1.bf16.msra.mxu0 %v1367
    %1969 = vmatprep.subr.bf16.mxu0 %v1364
    %1970 = vmatpush1.bf16.msra.mxu0 %v1363
    %1971 = vmatprep.subr.bf16.mxu0 %v1360
    %1972 = vmatpush1.bf16.msra.mxu0 %v1359
    %1973 = vmatprep.subr.bf16.mxu0 %v1356
    %1974 = vmatpush1.bf16.msra.mxu0 %v1355
    %1975 = vmatprep.subr.bf16.mxu0 %v1352
    %1976 = vmatpush1.bf16.msra.mxu0 %v1351
    %1977 = vmatprep.subr.bf16.mxu0 %v1348
    %1978 = vmatpush1.bf16.msra.mxu0 %v1347
    %1979 = vmatprep.subr.bf16.mxu0 %v1344
    %1980 = vmatpush1.bf16.msra.mxu0 %v1343
    %1981 = vmatprep.subr.bf16.mxu0 %v1340
    %1982 = vmatpush1.bf16.msra.mxu0 %v1339
    %1983 = vmatprep.subr.bf16.mxu0 %v1400
    %1984 = vmatpush2.bf16.msra.mxu0 %v1399
    %1985 = vmatprep.subr.bf16.mxu0 %v1396
    %1986 = vmatpush2.bf16.msra.mxu0 %v1395
    %1987 = vmatprep.subr.bf16.mxu0 %v1392
    %1988 = vmatpush2.bf16.msra.mxu0 %v1391
    %1989 = vmatprep.subr.bf16.mxu0 %v1388
    %1990 = vmatpush2.bf16.msra.mxu0 %v1387
    %1991 = vmatprep.subr.bf16.mxu0 %v1384
    %1992 = vmatpush2.bf16.msra.mxu0 %v1383
    %1993 = vmatprep.subr.bf16.mxu0 %v1380
    %1994 = vmatpush2.bf16.msra.mxu0 %v1379
    %1995 = vmatprep.subr.bf16.mxu0 %v1376
    %1996 = vmatpush2.bf16.msra.mxu0 %v1375
    %1997 = vmatprep.subr.bf16.mxu0 %v1372
    %1998 = vmatpush2.bf16.msra.mxu0 %v1371
    %1999 = vmatprep.mubr.bf16.mxu0 %v430
    %2000 = vmatmul.mubr.bf16.gmra.mxu0 %v429
    %v2001 = vpop.f32.mrf.mxu0
    %v2002 = vadd.f32 %v1961, %v2001
    %v2003 = vpop.f32.mrf.mxu0
    %v2004 = vadd.f32 %v1963, %v2003
    %v2005 = vpop.f32.mrf.mxu0
    %v2006 = vpop.f32.mrf.mxu0
    %2007 = vdwg.mxu0
    %2008 = vmatprep.subr.bf16.mxu0 %v1432
    %2009 = vmatpush1.bf16.msra.mxu0 %v1431
    %2010 = vmatprep.subr.bf16.mxu0 %v1428
    %2011 = vmatpush1.bf16.msra.mxu0 %v1427
    %2012 = vmatprep.subr.bf16.mxu0 %v1424
    %2013 = vmatpush1.bf16.msra.mxu0 %v1423
    %2014 = vmatprep.subr.bf16.mxu0 %v1420
    %2015 = vmatpush1.bf16.msra.mxu0 %v1419
    %2016 = vmatprep.subr.bf16.mxu0 %v1416
    %2017 = vmatpush1.bf16.msra.mxu0 %v1415
    %2018 = vmatprep.subr.bf16.mxu0 %v1412
    %2019 = vmatpush1.bf16.msra.mxu0 %v1411
    %2020 = vmatprep.subr.bf16.mxu0 %v1408
    %2021 = vmatpush1.bf16.msra.mxu0 %v1407
    %2022 = vmatprep.subr.bf16.mxu0 %v1404
    %2023 = vmatpush1.bf16.msra.mxu0 %v1403
    %2024 = vmatprep.subr.bf16.mxu0 %v1464
    %2025 = vmatpush2.bf16.msra.mxu0 %v1463
    %2026 = vmatprep.subr.bf16.mxu0 %v1460
    %2027 = vmatpush2.bf16.msra.mxu0 %v1459
    %2028 = vmatprep.subr.bf16.mxu0 %v1456
    %2029 = vmatpush2.bf16.msra.mxu0 %v1455
    %2030 = vmatprep.subr.bf16.mxu0 %v1452
    %2031 = vmatpush2.bf16.msra.mxu0 %v1451
    %2032 = vmatprep.subr.bf16.mxu0 %v1448
    %2033 = vmatpush2.bf16.msra.mxu0 %v1447
    %2034 = vmatprep.subr.bf16.mxu0 %v1444
    %2035 = vmatpush2.bf16.msra.mxu0 %v1443
    %2036 = vmatprep.subr.bf16.mxu0 %v1440
    %2037 = vmatpush2.bf16.msra.mxu0 %v1439
    %2038 = vmatprep.subr.bf16.mxu0 %v1436
    %2039 = vmatpush2.bf16.msra.mxu0 %v1435
    %2040 = vmatprep.mubr.bf16.mxu0 %v432
    %2041 = vmatmul.mubr.bf16.gmra.mxu0 %v431
    %v2042 = vpop.f32.mrf.mxu0
    %v2043 = vadd.f32 %v2002, %v2042
    %v2044 = vpop.f32.mrf.mxu0
    %v2045 = vadd.f32 %v2004, %v2044
    %v2046 = vpop.f32.mrf.mxu0
    %v2047 = vpop.f32.mrf.mxu0
    %2048 = vdwg.mxu0
    %v2049 = vmax.f32 %v1879, 0.0
    %v2050 = vmax.f32 %v1881, 0.0
    %v2051 = vmax.f32 %v2043, 0.0
    %v2052 = vmax.f32 %v2045, 0.0
    %v2053 = vpack.c.bf16 %v2049, %v2049
    %v2054 = vpack.c.bf16 %v2050, %v2050
    %v2055 = vpack.c.bf16 %v2051, %v2051
    %v2056 = vpack.c.bf16 %v2052, %v2052
    %v2057 = vld [vmem:[#allocation8] sm:$0xff]
    %v2058 = vld [vmem:[#allocation8 + $0x8] sm:$0xff]
    %v2059 = vld [vmem:[#allocation8 + $0x10] sm:$0xff]
    %v2060 = vld [vmem:[#allocation8 + $0x18] sm:$0xff]
    %v2061 = vld [vmem:[#allocation8 + $0x20] sm:$0xff]
    %v2062 = vld [vmem:[#allocation8 + $0x28] sm:$0xff]
    %v2063 = vld [vmem:[#allocation8 + $0x30] sm:$0xff]
    %v2064 = vld [vmem:[#allocation8 + $0x38] sm:$0xff]
    %v2065 = vld [vmem:[#allocation8 + $0x40] sm:$0xff]
    %v2066 = vld [vmem:[#allocation8 + $0x48] sm:$0xff]
    %v2067 = vld [vmem:[#allocation8 + $0x50] sm:$0xff]
    %v2068 = vld [vmem:[#allocation8 + $0x58] sm:$0xff]
    %v2069 = vld [vmem:[#allocation8 + $0x60] sm:$0xff]
    %v2070 = vld [vmem:[#allocation8 + $0x68] sm:$0xff]
    %v2071 = vld [vmem:[#allocation8 + $0x70] sm:$0xff]
    %v2072 = vld [vmem:[#allocation8 + $0x78] sm:$0xff]
    %v2073 = vld [vmem:[#allocation8 + $0x80] sm:$0xff]
    %v2074 = vld [vmem:[#allocation8 + $0x88] sm:$0xff]
    %v2075 = vld [vmem:[#allocation8 + $0x90] sm:$0xff]
    %v2076 = vld [vmem:[#allocation8 + $0x98] sm:$0xff]
    %v2077 = vld [vmem:[#allocation8 + $0xa0] sm:$0xff]
    %v2078 = vld [vmem:[#allocation8 + $0xa8] sm:$0xff]
    %v2079 = vld [vmem:[#allocation8 + $0xb0] sm:$0xff]
    %v2080 = vld [vmem:[#allocation8 + $0xb8] sm:$0xff]
    %v2081 = vld [vmem:[#allocation8 + $0xc0] sm:$0xff]
    %v2082 = vld [vmem:[#allocation8 + $0xc8] sm:$0xff]
    %v2083 = vld [vmem:[#allocation8 + $0xd0] sm:$0xff]
    %v2084 = vld [vmem:[#allocation8 + $0xd8] sm:$0xff]
    %v2085 = vld [vmem:[#allocation8 + $0xe0] sm:$0xff]
    %v2086 = vld [vmem:[#allocation8 + $0xe8] sm:$0xff]
    %v2087 = vld [vmem:[#allocation8 + $0xf0] sm:$0xff]
    %v2088 = vld [vmem:[#allocation8 + $0xf8] sm:$0xff]
    %v2089 = vld [vmem:[#allocation8 + $0x100] sm:$0xff]
    %v2090 = vld [vmem:[#allocation8 + $0x108] sm:$0xff]
    %v2091 = vld [vmem:[#allocation8 + $0x110] sm:$0xff]
    %v2092 = vld [vmem:[#allocation8 + $0x118] sm:$0xff]
    %v2093 = vld [vmem:[#allocation8 + $0x120] sm:$0xff]
    %v2094 = vld [vmem:[#allocation8 + $0x128] sm:$0xff]
    %v2095 = vld [vmem:[#allocation8 + $0x130] sm:$0xff]
    %v2096 = vld [vmem:[#allocation8 + $0x138] sm:$0xff]
    %v2097 = vld [vmem:[#allocation8 + $0x140] sm:$0xff]
    %v2098 = vld [vmem:[#allocation8 + $0x148] sm:$0xff]
    %v2099 = vld [vmem:[#allocation8 + $0x150] sm:$0xff]
    %v2100 = vld [vmem:[#allocation8 + $0x158] sm:$0xff]
    %v2101 = vld [vmem:[#allocation8 + $0x160] sm:$0xff]
    %v2102 = vld [vmem:[#allocation8 + $0x168] sm:$0xff]
    %v2103 = vld [vmem:[#allocation8 + $0x170] sm:$0xff]
    %v2104 = vld [vmem:[#allocation8 + $0x178] sm:$0xff]
    %v2105 = vld [vmem:[#allocation8 + $0x180] sm:$0xff]
    %v2106 = vld [vmem:[#allocation8 + $0x188] sm:$0xff]
    %v2107 = vld [vmem:[#allocation8 + $0x190] sm:$0xff]
    %v2108 = vld [vmem:[#allocation8 + $0x198] sm:$0xff]
    %v2109 = vld [vmem:[#allocation8 + $0x1a0] sm:$0xff]
    %v2110 = vld [vmem:[#allocation8 + $0x1a8] sm:$0xff]
    %v2111 = vld [vmem:[#allocation8 + $0x1b0] sm:$0xff]
    %v2112 = vld [vmem:[#allocation8 + $0x1b8] sm:$0xff]
    %v2113 = vld [vmem:[#allocation8 + $0x1c0] sm:$0xff]
    %v2114 = vld [vmem:[#allocation8 + $0x1c8] sm:$0xff]
    %v2115 = vld [vmem:[#allocation8 + $0x1d0] sm:$0xff]
    %v2116 = vld [vmem:[#allocation8 + $0x1d8] sm:$0xff]
    %v2117 = vld [vmem:[#allocation8 + $0x1e0] sm:$0xff]
    %v2118 = vld [vmem:[#allocation8 + $0x1e8] sm:$0xff]
    %v2119 = vld [vmem:[#allocation8 + $0x1f0] sm:$0xff]
    %v2120 = vld [vmem:[#allocation8 + $0x1f8] sm:$0xff]
    %v2121 = vld [vmem:[#allocation10] sm:$0x3]
    %v2123 = vlaneseq
    %v2124 = vshrl.u32 %v2123, 7
    %v2125 = vsub.s32 0, %v2124
    %v2126 = vrot.slane %v2121, %v2125
    %v2127 = vlaneseq
    %v2128 = vshrl.u32 %v2127, 7
    %v2129 = vsub.s32 1, %v2128
    %v2130 = vrot.slane %v2121, %v2129
    %v2197 = vunpack.c.l.b16 %v2057
    %v2198 = vunpack.c.h.b16 %v2057
    %v2199 = vunpack.c.l.b16 %v2058
    %v2200 = vunpack.c.h.b16 %v2058
    %v2201 = vunpack.c.l.b16 %v2059
    %v2202 = vunpack.c.h.b16 %v2059
    %v2203 = vunpack.c.l.b16 %v2060
    %v2204 = vunpack.c.h.b16 %v2060
    %v2205 = vunpack.c.l.b16 %v2061
    %v2206 = vunpack.c.h.b16 %v2061
    %v2207 = vunpack.c.l.b16 %v2062
    %v2208 = vunpack.c.h.b16 %v2062
    %v2209 = vunpack.c.l.b16 %v2063
    %v2210 = vunpack.c.h.b16 %v2063
    %v2211 = vunpack.c.l.b16 %v2064
    %v2212 = vunpack.c.h.b16 %v2064
    %v2213 = vunpack.c.l.b16 %v2065
    %v2214 = vunpack.c.h.b16 %v2065
    %v2215 = vunpack.c.l.b16 %v2066
    %v2216 = vunpack.c.h.b16 %v2066
    %v2217 = vunpack.c.l.b16 %v2067
    %v2218 = vunpack.c.h.b16 %v2067
    %v2219 = vunpack.c.l.b16 %v2068
    %v2220 = vunpack.c.h.b16 %v2068
    %v2221 = vunpack.c.l.b16 %v2069
    %v2222 = vunpack.c.h.b16 %v2069
    %v2223 = vunpack.c.l.b16 %v2070
    %v2224 = vunpack.c.h.b16 %v2070
    %v2225 = vunpack.c.l.b16 %v2071
    %v2226 = vunpack.c.h.b16 %v2071
    %v2227 = vunpack.c.l.b16 %v2072
    %v2228 = vunpack.c.h.b16 %v2072
    %v2229 = vunpack.c.l.b16 %v2073
    %v2230 = vunpack.c.h.b16 %v2073
    %v2231 = vunpack.c.l.b16 %v2074
    %v2232 = vunpack.c.h.b16 %v2074
    %v2233 = vunpack.c.l.b16 %v2075
    %v2234 = vunpack.c.h.b16 %v2075
    %v2235 = vunpack.c.l.b16 %v2076
    %v2236 = vunpack.c.h.b16 %v2076
    %v2237 = vunpack.c.l.b16 %v2077
    %v2238 = vunpack.c.h.b16 %v2077
    %v2239 = vunpack.c.l.b16 %v2078
    %v2240 = vunpack.c.h.b16 %v2078
    %v2241 = vunpack.c.l.b16 %v2079
    %v2242 = vunpack.c.h.b16 %v2079
    %v2243 = vunpack.c.l.b16 %v2080
    %v2244 = vunpack.c.h.b16 %v2080
    %v2245 = vunpack.c.l.b16 %v2081
    %v2246 = vunpack.c.h.b16 %v2081
    %v2247 = vunpack.c.l.b16 %v2082
    %v2248 = vunpack.c.h.b16 %v2082
    %v2249 = vunpack.c.l.b16 %v2083
    %v2250 = vunpack.c.h.b16 %v2083
    %v2251 = vunpack.c.l.b16 %v2084
    %v2252 = vunpack.c.h.b16 %v2084
    %v2253 = vunpack.c.l.b16 %v2085
    %v2254 = vunpack.c.h.b16 %v2085
    %v2255 = vunpack.c.l.b16 %v2086
    %v2256 = vunpack.c.h.b16 %v2086
    %v2257 = vunpack.c.l.b16 %v2087
    %v2258 = vunpack.c.h.b16 %v2087
    %v2259 = vunpack.c.l.b16 %v2088
    %v2260 = vunpack.c.h.b16 %v2088
    %v2261 = vunpack.c.l.b16 %v2089
    %v2262 = vunpack.c.h.b16 %v2089
    %v2263 = vunpack.c.l.b16 %v2090
    %v2264 = vunpack.c.h.b16 %v2090
    %v2265 = vunpack.c.l.b16 %v2091
    %v2266 = vunpack.c.h.b16 %v2091
    %v2267 = vunpack.c.l.b16 %v2092
    %v2268 = vunpack.c.h.b16 %v2092
    %v2269 = vunpack.c.l.b16 %v2093
    %v2270 = vunpack.c.h.b16 %v2093
    %v2271 = vunpack.c.l.b16 %v2094
    %v2272 = vunpack.c.h.b16 %v2094
    %v2273 = vunpack.c.l.b16 %v2095
    %v2274 = vunpack.c.h.b16 %v2095
    %v2275 = vunpack.c.l.b16 %v2096
    %v2276 = vunpack.c.h.b16 %v2096
    %v2277 = vunpack.c.l.b16 %v2097
    %v2278 = vunpack.c.h.b16 %v2097
    %v2279 = vunpack.c.l.b16 %v2098
    %v2280 = vunpack.c.h.b16 %v2098
    %v2281 = vunpack.c.l.b16 %v2099
    %v2282 = vunpack.c.h.b16 %v2099
    %v2283 = vunpack.c.l.b16 %v2100
    %v2284 = vunpack.c.h.b16 %v2100
    %v2285 = vunpack.c.l.b16 %v2101
    %v2286 = vunpack.c.h.b16 %v2101
    %v2287 = vunpack.c.l.b16 %v2102
    %v2288 = vunpack.c.h.b16 %v2102
    %v2289 = vunpack.c.l.b16 %v2103
    %v2290 = vunpack.c.h.b16 %v2103
    %v2291 = vunpack.c.l.b16 %v2104
    %v2292 = vunpack.c.h.b16 %v2104
    %v2293 = vunpack.c.l.b16 %v2105
    %v2294 = vunpack.c.h.b16 %v2105
    %v2295 = vunpack.c.l.b16 %v2106
    %v2296 = vunpack.c.h.b16 %v2106
    %v2297 = vunpack.c.l.b16 %v2107
    %v2298 = vunpack.c.h.b16 %v2107
    %v2299 = vunpack.c.l.b16 %v2108
    %v2300 = vunpack.c.h.b16 %v2108
    %v2301 = vunpack.c.l.b16 %v2109
    %v2302 = vunpack.c.h.b16 %v2109
    %v2303 = vunpack.c.l.b16 %v2110
    %v2304 = vunpack.c.h.b16 %v2110
    %v2305 = vunpack.c.l.b16 %v2111
    %v2306 = vunpack.c.h.b16 %v2111
    %v2307 = vunpack.c.l.b16 %v2112
    %v2308 = vunpack.c.h.b16 %v2112
    %v2309 = vunpack.c.l.b16 %v2113
    %v2310 = vunpack.c.h.b16 %v2113
    %v2311 = vunpack.c.l.b16 %v2114
    %v2312 = vunpack.c.h.b16 %v2114
    %v2313 = vunpack.c.l.b16 %v2115
    %v2314 = vunpack.c.h.b16 %v2115
    %v2315 = vunpack.c.l.b16 %v2116
    %v2316 = vunpack.c.h.b16 %v2116
    %v2317 = vunpack.c.l.b16 %v2117
    %v2318 = vunpack.c.h.b16 %v2117
    %v2319 = vunpack.c.l.b16 %v2118
    %v2320 = vunpack.c.h.b16 %v2118
    %v2321 = vunpack.c.l.b16 %v2119
    %v2322 = vunpack.c.h.b16 %v2119
    %v2323 = vunpack.c.l.b16 %v2120
    %v2324 = vunpack.c.h.b16 %v2120
    %v2325 = vpack.c.b16 %v2199, %v2197
    %v2326 = vpack.c.b16 %v2200, %v2198
    %v2327 = vpack.c.b16 %v2203, %v2201
    %v2328 = vpack.c.b16 %v2204, %v2202
    %v2329 = vpack.c.b16 %v2207, %v2205
    %v2330 = vpack.c.b16 %v2208, %v2206
    %v2331 = vpack.c.b16 %v2211, %v2209
    %v2332 = vpack.c.b16 %v2212, %v2210
    %v2333 = vpack.c.b16 %v2215, %v2213
    %v2334 = vpack.c.b16 %v2216, %v2214
    %v2335 = vpack.c.b16 %v2219, %v2217
    %v2336 = vpack.c.b16 %v2220, %v2218
    %v2337 = vpack.c.b16 %v2223, %v2221
    %v2338 = vpack.c.b16 %v2224, %v2222
    %v2339 = vpack.c.b16 %v2227, %v2225
    %v2340 = vpack.c.b16 %v2228, %v2226
    %v2341 = vpack.c.b16 %v2231, %v2229
    %v2342 = vpack.c.b16 %v2232, %v2230
    %v2343 = vpack.c.b16 %v2235, %v2233
    %v2344 = vpack.c.b16 %v2236, %v2234
    %v2345 = vpack.c.b16 %v2239, %v2237
    %v2346 = vpack.c.b16 %v2240, %v2238
    %v2347 = vpack.c.b16 %v2243, %v2241
    %v2348 = vpack.c.b16 %v2244, %v2242
    %v2349 = vpack.c.b16 %v2247, %v2245
    %v2350 = vpack.c.b16 %v2248, %v2246
    %v2351 = vpack.c.b16 %v2251, %v2249
    %v2352 = vpack.c.b16 %v2252, %v2250
    %v2353 = vpack.c.b16 %v2255, %v2253
    %v2354 = vpack.c.b16 %v2256, %v2254
    %v2355 = vpack.c.b16 %v2259, %v2257
    %v2356 = vpack.c.b16 %v2260, %v2258
    %v2357 = vpack.c.b16 %v2263, %v2261
    %v2358 = vpack.c.b16 %v2264, %v2262
    %v2359 = vpack.c.b16 %v2267, %v2265
    %v2360 = vpack.c.b16 %v2268, %v2266
    %v2361 = vpack.c.b16 %v2271, %v2269
    %v2362 = vpack.c.b16 %v2272, %v2270
    %v2363 = vpack.c.b16 %v2275, %v2273
    %v2364 = vpack.c.b16 %v2276, %v2274
    %v2365 = vpack.c.b16 %v2279, %v2277
    %v2366 = vpack.c.b16 %v2280, %v2278
    %v2367 = vpack.c.b16 %v2283, %v2281
    %v2368 = vpack.c.b16 %v2284, %v2282
    %v2369 = vpack.c.b16 %v2287, %v2285
    %v2370 = vpack.c.b16 %v2288, %v2286
    %v2371 = vpack.c.b16 %v2291, %v2289
    %v2372 = vpack.c.b16 %v2292, %v2290
    %v2373 = vpack.c.b16 %v2295, %v2293
    %v2374 = vpack.c.b16 %v2296, %v2294
    %v2375 = vpack.c.b16 %v2299, %v2297
    %v2376 = vpack.c.b16 %v2300, %v2298
    %v2377 = vpack.c.b16 %v2303, %v2301
    %v2378 = vpack.c.b16 %v2304, %v2302
    %v2379 = vpack.c.b16 %v2307, %v2305
    %v2380 = vpack.c.b16 %v2308, %v2306
    %v2381 = vpack.c.b16 %v2311, %v2309
    %v2382 = vpack.c.b16 %v2312, %v2310
    %v2383 = vpack.c.b16 %v2315, %v2313
    %v2384 = vpack.c.b16 %v2316, %v2314
    %v2385 = vpack.c.b16 %v2319, %v2317
    %v2386 = vpack.c.b16 %v2320, %v2318
    %v2387 = vpack.c.b16 %v2323, %v2321
    %v2388 = vpack.c.b16 %v2324, %v2322
    %2453 = vmatprep.subr.bf16.mxu0 %v2340
    %2454 = vmatpush1.bf16.msra.mxu0 %v2339
    %2455 = vmatprep.subr.bf16.mxu0 %v2338
    %2456 = vmatpush1.bf16.msra.mxu0 %v2337
    %2457 = vmatprep.subr.bf16.mxu0 %v2336
    %2458 = vmatpush1.bf16.msra.mxu0 %v2335
    %2459 = vmatprep.subr.bf16.mxu0 %v2334
    %2460 = vmatpush1.bf16.msra.mxu0 %v2333
    %2461 = vmatprep.subr.bf16.mxu0 %v2332
    %2462 = vmatpush1.bf16.msra.mxu0 %v2331
    %2463 = vmatprep.subr.bf16.mxu0 %v2330
    %2464 = vmatpush1.bf16.msra.mxu0 %v2329
    %2465 = vmatprep.subr.bf16.mxu0 %v2328
    %2466 = vmatpush1.bf16.msra.mxu0 %v2327
    %2467 = vmatprep.subr.bf16.mxu0 %v2326
    %2468 = vmatpush1.bf16.msra.mxu0 %v2325
    %2469 = vmatprep.subr.bf16.mxu0 %v2356
    %2470 = vmatpush2.bf16.msra.mxu0 %v2355
    %2471 = vmatprep.subr.bf16.mxu0 %v2354
    %2472 = vmatpush2.bf16.msra.mxu0 %v2353
    %2473 = vmatprep.subr.bf16.mxu0 %v2352
    %2474 = vmatpush2.bf16.msra.mxu0 %v2351
    %2475 = vmatprep.subr.bf16.mxu0 %v2350
    %2476 = vmatpush2.bf16.msra.mxu0 %v2349
    %2477 = vmatprep.subr.bf16.mxu0 %v2348
    %2478 = vmatpush2.bf16.msra.mxu0 %v2347
    %2479 = vmatprep.subr.bf16.mxu0 %v2346
    %2480 = vmatpush2.bf16.msra.mxu0 %v2345
    %2481 = vmatprep.subr.bf16.mxu0 %v2344
    %2482 = vmatpush2.bf16.msra.mxu0 %v2343
    %2483 = vmatprep.subr.bf16.mxu0 %v2342
    %2484 = vmatpush2.bf16.msra.mxu0 %v2341
    %2485 = vmatprep.mubr.bf16.mxu0 %v2054
    %2486 = vmatmul.mubr.bf16.gmra.mxu0 %v2053
    %v2487 = vpop.f32.mrf.mxu0
    %v2488 = vadd.f32 %v2126, %v2487
    %v2489 = vpop.f32.mrf.mxu0
    %v2490 = vadd.f32 %v2130, %v2489
    %v2491 = vpop.f32.mrf.mxu0
    %v2492 = vpop.f32.mrf.mxu0
    %2493 = vdwg.mxu0
    %2494 = vmatprep.subr.bf16.mxu0 %v2372
    %2495 = vmatpush1.bf16.msra.mxu0 %v2371
    %2496 = vmatprep.subr.bf16.mxu0 %v2370
    %2497 = vmatpush1.bf16.msra.mxu0 %v2369
    %2498 = vmatprep.subr.bf16.mxu0 %v2368
    %2499 = vmatpush1.bf16.msra.mxu0 %v2367
    %2500 = vmatprep.subr.bf16.mxu0 %v2366
    %2501 = vmatpush1.bf16.msra.mxu0 %v2365
    %2502 = vmatprep.subr.bf16.mxu0 %v2364
    %2503 = vmatpush1.bf16.msra.mxu0 %v2363
    %2504 = vmatprep.subr.bf16.mxu0 %v2362
    %2505 = vmatpush1.bf16.msra.mxu0 %v2361
    %2506 = vmatprep.subr.bf16.mxu0 %v2360
    %2507 = vmatpush1.bf16.msra.mxu0 %v2359
    %2508 = vmatprep.subr.bf16.mxu0 %v2358
    %2509 = vmatpush1.bf16.msra.mxu0 %v2357
    %2510 = vmatprep.subr.bf16.mxu0 %v2388
    %2511 = vmatpush2.bf16.msra.mxu0 %v2387
    %2512 = vmatprep.subr.bf16.mxu0 %v2386
    %2513 = vmatpush2.bf16.msra.mxu0 %v2385
    %2514 = vmatprep.subr.bf16.mxu0 %v2384
    %2515 = vmatpush2.bf16.msra.mxu0 %v2383
    %2516 = vmatprep.subr.bf16.mxu0 %v2382
    %2517 = vmatpush2.bf16.msra.mxu0 %v2381
    %2518 = vmatprep.subr.bf16.mxu0 %v2380
    %2519 = vmatpush2.bf16.msra.mxu0 %v2379
    %2520 = vmatprep.subr.bf16.mxu0 %v2378
    %2521 = vmatpush2.bf16.msra.mxu0 %v2377
    %2522 = vmatprep.subr.bf16.mxu0 %v2376
    %2523 = vmatpush2.bf16.msra.mxu0 %v2375
    %2524 = vmatprep.subr.bf16.mxu0 %v2374
    %2525 = vmatpush2.bf16.msra.mxu0 %v2373
    %2526 = vmatprep.mubr.bf16.mxu0 %v2056
    %2527 = vmatmul.mubr.bf16.gmra.mxu0 %v2055
    %v2528 = vpop.f32.mrf.mxu0
    %v2529 = vadd.f32 %v2488, %v2528
    %v2530 = vpop.f32.mrf.mxu0
    %v2531 = vadd.f32 %v2490, %v2530
    %v2532 = vpop.f32.mrf.mxu0
    %v2533 = vpop.f32.mrf.mxu0
    %2534 = vdwg.mxu0
    %v2535 = vmax.f32 %v2529, 0.0
    %v2536 = vmax.f32 %v2531, 0.0
    %v2537 = vpack.c.bf16 %v2535, %v2535
    %v2538 = vpack.c.bf16 %v2536, %v2536
    %v2539 = vld [vmem:[%s5] sm:$0xf]
    %v2540 = vld [vmem:[%s5 + $0x4] sm:$0xf]
    %v2541 = vld [vmem:[%s5 + $0x8] sm:$0xf]
    %v2542 = vld [vmem:[%s5 + $0xc] sm:$0xf]
    %v2543 = vld [vmem:[%s5 + $0x10] sm:$0xf]
    %v2544 = vld [vmem:[%s5 + $0x14] sm:$0xf]
    %v2545 = vld [vmem:[%s5 + $0x18] sm:$0xf]
    %v2546 = vld [vmem:[%s5 + $0x1c] sm:$0xf]
    %v2547 = vld [vmem:[%s5 + $0x20] sm:$0xf]
    %v2548 = vld [vmem:[%s5 + $0x24] sm:$0xf]
    %v2549 = vld [vmem:[%s5 + $0x28] sm:$0xf]
    %v2550 = vld [vmem:[%s5 + $0x2c] sm:$0xf]
    %v2551 = vld [vmem:[%s5 + $0x30] sm:$0xf]
    %v2552 = vld [vmem:[%s5 + $0x34] sm:$0xf]
    %v2553 = vld [vmem:[%s5 + $0x38] sm:$0xf]
    %v2554 = vld [vmem:[%s5 + $0x3c] sm:$0xf]
    %v2555 = vld [vmem:[%s5 + $0x40] sm:$0xf]
    %v2556 = vld [vmem:[%s5 + $0x44] sm:$0xf]
    %v2557 = vld [vmem:[%s5 + $0x48] sm:$0xf]
    %v2558 = vld [vmem:[%s5 + $0x4c] sm:$0xf]
    %v2559 = vld [vmem:[%s5 + $0x50] sm:$0xf]
    %v2560 = vld [vmem:[%s5 + $0x54] sm:$0xf]
    %v2561 = vld [vmem:[%s5 + $0x58] sm:$0xf]
    %v2562 = vld [vmem:[%s5 + $0x5c] sm:$0xf]
    %v2563 = vld [vmem:[%s5 + $0x60] sm:$0xf]
    %v2564 = vld [vmem:[%s5 + $0x64] sm:$0xf]
    %v2565 = vld [vmem:[%s5 + $0x68] sm:$0xf]
    %v2566 = vld [vmem:[%s5 + $0x6c] sm:$0xf]
    %v2567 = vld [vmem:[%s5 + $0x70] sm:$0xf]
    %v2568 = vld [vmem:[%s5 + $0x74] sm:$0xf]
    %v2569 = vld [vmem:[%s5 + $0x78] sm:$0xf]
    %v2570 = vld [vmem:[%s5 + $0x7c] sm:$0xf]
    %v2571 = vld [vmem:[#allocation11] sm:$0x1]
    %v2573 = vlaneseq
    %v2574 = vshrl.u32 %v2573, 7
    %v2575 = vsub.s32 0, %v2574
    %v2576 = vrot.slane %v2571, %v2575
    %v2610 = vunpack.c.l.b16 %v2539
    %v2611 = vunpack.c.l.b16 %v2540
    %v2612 = vunpack.c.l.b16 %v2541
    %v2613 = vunpack.c.l.b16 %v2542
    %v2614 = vunpack.c.l.b16 %v2543
    %v2615 = vunpack.c.l.b16 %v2544
    %v2616 = vunpack.c.l.b16 %v2545
    %v2617 = vunpack.c.l.b16 %v2546
    %v2618 = vunpack.c.l.b16 %v2547
    %v2619 = vunpack.c.l.b16 %v2548
    %v2620 = vunpack.c.l.b16 %v2549
    %v2621 = vunpack.c.l.b16 %v2550
    %v2622 = vunpack.c.l.b16 %v2551
    %v2623 = vunpack.c.l.b16 %v2552
    %v2624 = vunpack.c.l.b16 %v2553
    %v2625 = vunpack.c.l.b16 %v2554
    %v2626 = vunpack.c.l.b16 %v2555
    %v2627 = vunpack.c.l.b16 %v2556
    %v2628 = vunpack.c.l.b16 %v2557
    %v2629 = vunpack.c.l.b16 %v2558
    %v2630 = vunpack.c.l.b16 %v2559
    %v2631 = vunpack.c.l.b16 %v2560
    %v2632 = vunpack.c.l.b16 %v2561
    %v2633 = vunpack.c.l.b16 %v2562
    %v2634 = vunpack.c.l.b16 %v2563
    %v2635 = vunpack.c.l.b16 %v2564
    %v2636 = vunpack.c.l.b16 %v2565
    %v2637 = vunpack.c.l.b16 %v2566
    %v2638 = vunpack.c.l.b16 %v2567
    %v2639 = vunpack.c.l.b16 %v2568
    %v2640 = vunpack.c.l.b16 %v2569
    %v2641 = vunpack.c.l.b16 %v2570
    %v2642 = vpack.c.b16 %v2611, %v2610
    %v2643 = vpack.c.b16 %v2613, %v2612
    %v2644 = vpack.c.b16 %v2615, %v2614
    %v2645 = vpack.c.b16 %v2617, %v2616
    %v2646 = vpack.c.b16 %v2619, %v2618
    %v2647 = vpack.c.b16 %v2621, %v2620
    %v2648 = vpack.c.b16 %v2623, %v2622
    %v2649 = vpack.c.b16 %v2625, %v2624
    %v2650 = vpack.c.b16 %v2627, %v2626
    %v2651 = vpack.c.b16 %v2629, %v2628
    %v2652 = vpack.c.b16 %v2631, %v2630
    %v2653 = vpack.c.b16 %v2633, %v2632
    %v2654 = vpack.c.b16 %v2635, %v2634
    %v2655 = vpack.c.b16 %v2637, %v2636
    %v2656 = vpack.c.b16 %v2639, %v2638
    %v2657 = vpack.c.b16 %v2641, %v2640
    %2674 = vmatprep.subr.bf16.mxu0 0
    %2675 = vmatpush1.bf16.msra.mxu0 %v2649
    %2676 = vmatprep.subr.bf16.mxu0 0
    %2677 = vmatpush1.bf16.msra.mxu0 %v2648
    %2678 = vmatprep.subr.bf16.mxu0 0
    %2679 = vmatpush1.bf16.msra.mxu0 %v2647
    %2680 = vmatprep.subr.bf16.mxu0 0
    %2681 = vmatpush1.bf16.msra.mxu0 %v2646
    %2682 = vmatprep.subr.bf16.mxu0 0
    %2683 = vmatpush1.bf16.msra.mxu0 %v2645
    %2684 = vmatprep.subr.bf16.mxu0 0
    %2685 = vmatpush1.bf16.msra.mxu0 %v2644
    %2686 = vmatprep.subr.bf16.mxu0 0
    %2687 = vmatpush1.bf16.msra.mxu0 %v2643
    %2688 = vmatprep.subr.bf16.mxu0 0
    %2689 = vmatpush1.bf16.msra.mxu0 %v2642
    %2690 = vmatprep.subr.bf16.mxu0 0
    %2691 = vmatpush2.bf16.msra.mxu0 %v2657
    %2692 = vmatprep.subr.bf16.mxu0 0
    %2693 = vmatpush2.bf16.msra.mxu0 %v2656
    %2694 = vmatprep.subr.bf16.mxu0 0
    %2695 = vmatpush2.bf16.msra.mxu0 %v2655
    %2696 = vmatprep.subr.bf16.mxu0 0
    %2697 = vmatpush2.bf16.msra.mxu0 %v2654
    %2698 = vmatprep.subr.bf16.mxu0 0
    %2699 = vmatpush2.bf16.msra.mxu0 %v2653
    %2700 = vmatprep.subr.bf16.mxu0 0
    %2701 = vmatpush2.bf16.msra.mxu0 %v2652
    %2702 = vmatprep.subr.bf16.mxu0 0
    %2703 = vmatpush2.bf16.msra.mxu0 %v2651
    %2704 = vmatprep.subr.bf16.mxu0 0
    %2705 = vmatpush2.bf16.msra.mxu0 %v2650
    %2706 = vmatprep.mubr.bf16.mxu0 %v2538
    %2707 = vmatmul.mubr.bf16.gmra.mxu0 %v2537
    %v2708 = vpop.f32.mrf.mxu0
    %v2709 = vadd.f32 %v2576, %v2708
    %v2710 = vpop.f32.mrf.mxu0
    %v2711 = vpop.f32.mrf.mxu0
    %v2712 = vpop.f32.mrf.mxu0
    %2713 = vdwg.mxu0
    %v2714 = vmax.f32 %v2709, 0.0
    %v2715 = vpack.c.bf16 %v2714, %v2714
    %v2716 = vld [vmem:[%s7] sm:$0xf]
    %v2717 = vld [vmem:[%s7 + $0x4] sm:$0xf]
    %v2718 = vld [vmem:[%s7 + $0x8] sm:$0xf]
    %v2719 = vld [vmem:[%s7 + $0xc] sm:$0xf]
    %v2720 = vld [vmem:[%s7 + $0x10] sm:$0xf]
    %v2721 = vld [vmem:[%s7 + $0x14] sm:$0xf]
    %v2722 = vld [vmem:[%s7 + $0x18] sm:$0xf]
    %v2723 = vld [vmem:[%s7 + $0x1c] sm:$0xf]
    %v2724 = vld [vmem:[%s7 + $0x20] sm:$0xf]
    %v2725 = vld [vmem:[%s7 + $0x24] sm:$0xf]
    %v2726 = vld [vmem:[%s7 + $0x28] sm:$0xf]
    %v2727 = vld [vmem:[%s7 + $0x2c] sm:$0xf]
    %v2728 = vld [vmem:[%s7 + $0x30] sm:$0xf]
    %v2729 = vld [vmem:[%s7 + $0x34] sm:$0xf]
    %v2730 = vld [vmem:[%s7 + $0x38] sm:$0xf]
    %v2731 = vld [vmem:[%s7 + $0x3c] sm:$0xf]
    %v2732 = vld [vmem:[#allocation13] sm:$0x1]
    %v2734 = vlaneseq
    %v2735 = vshrl.u32 %v2734, 7
    %v2736 = vsub.s32 0, %v2735
    %v2737 = vrot.slane %v2732, %v2736
    %v2755 = vunpack.c.l.b16 %v2716
    %v2756 = vunpack.c.l.b16 %v2717
    %v2757 = vunpack.c.l.b16 %v2718
    %v2758 = vunpack.c.l.b16 %v2719
    %v2759 = vunpack.c.l.b16 %v2720
    %v2760 = vunpack.c.l.b16 %v2721
    %v2761 = vunpack.c.l.b16 %v2722
    %v2762 = vunpack.c.l.b16 %v2723
    %v2763 = vunpack.c.l.b16 %v2724
    %v2764 = vunpack.c.l.b16 %v2725
    %v2765 = vunpack.c.l.b16 %v2726
    %v2766 = vunpack.c.l.b16 %v2727
    %v2767 = vunpack.c.l.b16 %v2728
    %v2768 = vunpack.c.l.b16 %v2729
    %v2769 = vunpack.c.l.b16 %v2730
    %v2770 = vunpack.c.l.b16 %v2731
    %v2771 = vpack.c.b16 %v2756, %v2755
    %v2772 = vpack.c.b16 %v2758, %v2757
    %v2773 = vpack.c.b16 %v2760, %v2759
    %v2774 = vpack.c.b16 %v2762, %v2761
    %v2775 = vpack.c.b16 %v2764, %v2763
    %v2776 = vpack.c.b16 %v2766, %v2765
    %v2777 = vpack.c.b16 %v2768, %v2767
    %v2778 = vpack.c.b16 %v2770, %v2769
    %2787 = vmatprep.subr.bf16.mxu0 0
    %2788 = vmatpush1.bf16.msra.mxu0 %v2778
    %2789 = vmatprep.subr.bf16.mxu0 0
    %2790 = vmatpush1.bf16.msra.mxu0 %v2777
    %2791 = vmatprep.subr.bf16.mxu0 0
    %2792 = vmatpush1.bf16.msra.mxu0 %v2776
    %2793 = vmatprep.subr.bf16.mxu0 0
    %2794 = vmatpush1.bf16.msra.mxu0 %v2775
    %2795 = vmatprep.subr.bf16.mxu0 0
    %2796 = vmatpush1.bf16.msra.mxu0 %v2774
    %2797 = vmatprep.subr.bf16.mxu0 0
    %2798 = vmatpush1.bf16.msra.mxu0 %v2773
    %2799 = vmatprep.subr.bf16.mxu0 0
    %2800 = vmatpush1.bf16.msra.mxu0 %v2772
    %2801 = vmatprep.subr.bf16.mxu0 0
    %2802 = vmatpush1.bf16.msra.mxu0 %v2771
    %2803 = vmatprep.subr.bf16.mxu0 0
    %2804 = vmatpush2.bf16.msra.mxu0 0
    %2805 = vmatprep.subr.bf16.mxu0 0
    %2806 = vmatpush2.bf16.msra.mxu0 0
    %2807 = vmatprep.subr.bf16.mxu0 0
    %2808 = vmatpush2.bf16.msra.mxu0 0
    %2809 = vmatprep.subr.bf16.mxu0 0
    %2810 = vmatpush2.bf16.msra.mxu0 0
    %2811 = vmatprep.subr.bf16.mxu0 0
    %2812 = vmatpush2.bf16.msra.mxu0 0
    %2813 = vmatprep.subr.bf16.mxu0 0
    %2814 = vmatpush2.bf16.msra.mxu0 0
    %2815 = vmatprep.subr.bf16.mxu0 0
    %2816 = vmatpush2.bf16.msra.mxu0 0
    %2817 = vmatprep.subr.bf16.mxu0 0
    %2818 = vmatpush2.bf16.msra.mxu0 0
    %2819 = vmatprep.mubr.bf16.mxu0 0
    %2820 = vmatmul.mubr.bf16.gmra.mxu0 %v2715
    %v2821 = vpop.f32.mrf.mxu0
    %v2822 = vadd.f32 %v2737, %v2821
    %v2823 = vpop.f32.mrf.mxu0
    %v2824 = vpop.f32.mrf.mxu0
    %v2825 = vpop.f32.mrf.mxu0
    %2826 = vdwg.mxu0
    %v2827 = vmax.f32 %v2822, 0.0
    %v2828 = vpack.c.bf16 %v2827, %v2827
    %v2829 = vld [vmem:[%s9] sm:$0xf]
    %v2830 = vld [vmem:[%s9 + $0x4] sm:$0xf]
    %v2831 = vld [vmem:[%s9 + $0x8] sm:$0xf]
    %v2832 = vld [vmem:[%s9 + $0xc] sm:$0xf]
    %v2833 = vld [vmem:[%s9 + $0x10] sm:$0xf]
    %v2834 = vld [vmem:[%s9 + $0x14] sm:$0xf]
    %v2835 = vld [vmem:[%s9 + $0x18] sm:$0xf]
    %v2836 = vld [vmem:[%s9 + $0x1c] sm:$0xf]
    %v2837 = vld [vmem:[%s10] sm:$0x1]
    %v2839 = vlaneseq
    %v2840 = vshrl.u32 %v2839, 7
    %v2841 = vsub.s32 0, %v2840
    %v2842 = vrot.slane %v2837, %v2841
    %v2852 = vunpack.c.l.b16 %v2829
    %v2853 = vunpack.c.l.b16 %v2830
    %v2854 = vunpack.c.l.b16 %v2831
    %v2855 = vunpack.c.l.b16 %v2832
    %v2856 = vunpack.c.l.b16 %v2833
    %v2857 = vunpack.c.l.b16 %v2834
    %v2858 = vunpack.c.l.b16 %v2835
    %v2859 = vunpack.c.l.b16 %v2836
    %v2860 = vpack.c.b16 %v2853, %v2852
    %v2861 = vpack.c.b16 %v2855, %v2854
    %v2862 = vpack.c.b16 %v2857, %v2856
    %v2863 = vpack.c.b16 %v2859, %v2858
    %vm2868 = vcmask 523264
    %v2870 = vsel %vm2868, %v2828, 0
    %2872 = vmatprep.subr.bf16.mxu0 0
    %2873 = vmatpush1.bf16.msra.mxu0 0
    %2874 = vmatprep.subr.bf16.mxu0 0
    %2875 = vmatpush1.bf16.msra.mxu0 0
    %2876 = vmatprep.subr.bf16.mxu0 0
    %2877 = vmatpush1.bf16.msra.mxu0 0
    %2878 = vmatprep.subr.bf16.mxu0 0
    %2879 = vmatpush1.bf16.msra.mxu0 0
    %2880 = vmatprep.subr.bf16.mxu0 0
    %2881 = vmatpush1.bf16.msra.mxu0 %v2863
    %2882 = vmatprep.subr.bf16.mxu0 0
    %2883 = vmatpush1.bf16.msra.mxu0 %v2862
    %2884 = vmatprep.subr.bf16.mxu0 0
    %2885 = vmatpush1.bf16.msra.mxu0 %v2861
    %2886 = vmatprep.subr.bf16.mxu0 0
    %2887 = vmatpush1.bf16.msra.mxu0 %v2860
    %2888 = vmatprep.subr.bf16.mxu0 0
    %2889 = vmatpush2.bf16.msra.mxu0 0
    %2890 = vmatprep.subr.bf16.mxu0 0
    %2891 = vmatpush2.bf16.msra.mxu0 0
    %2892 = vmatprep.subr.bf16.mxu0 0
    %2893 = vmatpush2.bf16.msra.mxu0 0
    %2894 = vmatprep.subr.bf16.mxu0 0
    %2895 = vmatpush2.bf16.msra.mxu0 0
    %2896 = vmatprep.subr.bf16.mxu0 0
    %2897 = vmatpush2.bf16.msra.mxu0 0
    %2898 = vmatprep.subr.bf16.mxu0 0
    %2899 = vmatpush2.bf16.msra.mxu0 0
    %2900 = vmatprep.subr.bf16.mxu0 0
    %2901 = vmatpush2.bf16.msra.mxu0 0
    %2902 = vmatprep.subr.bf16.mxu0 0
    %2903 = vmatpush2.bf16.msra.mxu0 0
    %2904 = vmatprep.mubr.bf16.mxu0 0
    %2905 = vmatmul.mubr.bf16.gmra.mxu0 %v2870
    %v2906 = vpop.f32.mrf.mxu0
    %v2907 = vadd.f32 %v2842, %v2906
    %v2908 = vpop.f32.mrf.mxu0
    %v2909 = vpop.f32.mrf.mxu0
    %v2910 = vpop.f32.mrf.mxu0
    %2911 = vdwg.mxu0
    %v2912 = vmax.f32 %v2907, 0.0
    %v2913 = vpack.c.bf16 %v2912, %v2912
    %v2914 = vld [vmem:[%s11] sm:$0xf]
    %v2915 = vld [vmem:[%s11 + $0x4] sm:$0xf]
    %v2916 = vld [vmem:[%s11 + $0x8] sm:$0xf]
    %v2917 = vld [vmem:[%s11 + $0xc] sm:$0xf]
    %v2918 = vld [vmem:[%s12] sm:$0x1]
    %v2920 = vlaneseq
    %v2921 = vshrl.u32 %v2920, 7
    %v2922 = vsub.s32 0, %v2921
    %v2923 = vrot.slane %v2918, %v2922
    %v2929 = vunpack.c.l.b16 %v2914
    %v2930 = vunpack.c.l.b16 %v2915
    %v2931 = vunpack.c.l.b16 %v2916
    %v2932 = vunpack.c.l.b16 %v2917
    %v2933 = vpack.c.b16 %v2930, %v2929
    %v2934 = vpack.c.b16 %v2932, %v2931
    %vm2937 = vcmask 261120
    %v2939 = vsel %vm2937, %v2913, 0
    %2941 = vmatprep.subr.bf16.mxu0 0
    %2942 = vmatpush1.bf16.msra.mxu0 0
    %2943 = vmatprep.subr.bf16.mxu0 0
    %2944 = vmatpush1.bf16.msra.mxu0 0
    %2945 = vmatprep.subr.bf16.mxu0 0
    %2946 = vmatpush1.bf16.msra.mxu0 0
    %2947 = vmatprep.subr.bf16.mxu0 0
    %2948 = vmatpush1.bf16.msra.mxu0 0
    %2949 = vmatprep.subr.bf16.mxu0 0
    %2950 = vmatpush1.bf16.msra.mxu0 0
    %2951 = vmatprep.subr.bf16.mxu0 0
    %2952 = vmatpush1.bf16.msra.mxu0 0
    %2953 = vmatprep.subr.bf16.mxu0 0
    %2954 = vmatpush1.bf16.msra.mxu0 %v2934
    %2955 = vmatprep.subr.bf16.mxu0 0
    %2956 = vmatpush1.bf16.msra.mxu0 %v2933
    %2957 = vmatprep.subr.bf16.mxu0 0
    %2958 = vmatpush2.bf16.msra.mxu0 0
    %2959 = vmatprep.subr.bf16.mxu0 0
    %2960 = vmatpush2.bf16.msra.mxu0 0
    %2961 = vmatprep.subr.bf16.mxu0 0
    %2962 = vmatpush2.bf16.msra.mxu0 0
    %2963 = vmatprep.subr.bf16.mxu0 0
    %2964 = vmatpush2.bf16.msra.mxu0 0
    %2965 = vmatprep.subr.bf16.mxu0 0
    %2966 = vmatpush2.bf16.msra.mxu0 0
    %2967 = vmatprep.subr.bf16.mxu0 0
    %2968 = vmatpush2.bf16.msra.mxu0 0
    %2969 = vmatprep.subr.bf16.mxu0 0
    %2970 = vmatpush2.bf16.msra.mxu0 0
    %2971 = vmatprep.subr.bf16.mxu0 0
    %2972 = vmatpush2.bf16.msra.mxu0 0
    %2973 = vmatprep.mubr.bf16.mxu0 0
    %2974 = vmatmul.mubr.bf16.gmra.mxu0 %v2939
    %v2975 = vpop.f32.mrf.mxu0
    %v2976 = vadd.f32 %v2923, %v2975
    %v2977 = vpop.f32.mrf.mxu0
    %v2978 = vpop.f32.mrf.mxu0
    %v2979 = vpop.f32.mrf.mxu0
    %2980 = vdwg.mxu0
    %2981 = vst [vmem:[#allocation14] sm:$0xff] %v2976
    // Predicated region
    $region82: #{tpu_custom_call.1} parent=1 // pred_check
      _
    $region83: #{tpu_custom_call.1} parent=1 // pred_check_branch
      %2983 = sbr.rel (0) target = $region85
    $region84: #{tpu_custom_call.1} parent=1 // pred_region
      %s2985 = ssub.s32 128, 128
      %2986 = vsyncadd [#allocation4], %s2985
      %s2988 = sshll.u32 [#allocation14], 4
      %s2989 = int_to_ptr.vmem [resolvable:$true] %s2988
      %2991 = dma.vmem_to_hbm [thread:$0]  %s2989, 128, %s13, [#allocation4]
    $region85: #{tpu_custom_call.1} parent=1 // pred_fallthru
      _
    // Predicated region
    $region86: #{tpu_custom_call.1} parent=1 // pred_check
      _
    $region87: #{tpu_custom_call.1} parent=1 // pred_check_branch
      %2993 = sbr.rel (0) target = $region89
    $region88: #{tpu_custom_call.1} parent=1 // pred_region
      %2994 = dma.done [#allocation4], 128
    $region89: #{tpu_custom_call.1} parent=1 // pred_fallthru
      _
    %2995 = vsyncpa [#allocation3], 1
    %2996 = vsyncpa [#allocation6], 1
    %2997 = vsyncpa [#allocation9], 1
    %2998 = vsyncpa [#allocation12], 1
    %2999 = vsyncpa [#allocation4], 1

</llo_original>
